<compile_context>
chip_gen: v7x
topology: tpu7x:2x2x1
jax: 0.10.0
libtpu: 0.0.40
codegen_flags: <defaults>
</compile_context>

<pallas_src>
import functools

import jax
import jax.numpy as jnp
from jax.experimental import pallas as pl
from jax.experimental.pallas import tpu as pltpu

LANES = 128
SUBLANES = 8


def _round_up(x, m):
    return (x + m - 1) // m * m


def _cnn_layer_kernel(x_ref, w_ref, b_ref, sel_ref, o_ref, *,
                      cnn_kernel, cnn_stride, mp_kernel, mp_stride,
                      w_pad, conv_len, hmax_len, wmax_len, row_lanes, pool_out):
    """One batch element per grid step.  Channels on sublanes, spatial on lanes.

    x_ref:   (1, Cin_p, L)            flattened zero-padded image (f32)
    w_ref:   (Cout_p, KH*KW*Cin_p)    conv weights (f32 or bf16)
    b_ref:   (Cout_p, 1)              bias (f32)
    sel_ref: (PH*row_lanes, PH*PW)    0/1 pooled-position selection matrix (f32)
    o_ref:   (1, Cout_p, PH*PW)       pooled output, row-major pooled spatial (f32)
    """
    KH, KW = cnn_kernel
    SH, SW = cnn_stride
    MKH, MKW = mp_kernel
    MSH, MSW = mp_stride
    PH, PW = pool_out

    xc = x_ref[0]                                       # (Cin_p, L)

    # ---- im2col: tap (kh, kw) is one lane-slice of the flat image; stacking the
    #      KH*KW taps along sublanes (each piece = Cin_p = 8 rows) is layout-trivial.
    taps = []
    for kh in range(KH):
        for kw in range(KW):
            off = kh * w_pad + kw
            taps.append(xc[:, off:off + conv_len])      # (Cin_p, conv_len)
    patches = jnp.concatenate(taps, axis=0)             # (KH*KW*Cin_p, conv_len)

    # ---- Conv2d (stride 1) + bias + ReLU: ONE MXU matmul, spatial lane-dense ----
    conv = jnp.dot(w_ref[...], patches.astype(w_ref.dtype),
                   preferred_element_type=jnp.float32)  # (Cout_p, conv_len)
    conv = jnp.maximum(conv + b_ref[...], 0.0)

    # ---- MaxPool2d fused (conv stride folded into the flat-lane arithmetic) ----
    # wm[:, i*RS + j*CS] = max_{ph,pw} conv1[(i*MSH+ph)*SH, (j*MSW+pw)*SW]
    hm = conv[:, :hmax_len]
    for ph in range(1, MKH):
        off = ph * SH * w_pad                           # multiple of 128 -> free slice
        hm = jnp.maximum(hm, conv[:, off:off + hmax_len])
    wm = hm[:, :wmax_len]
    for pw in range(1, MKW):
        off = pw * SW                                   # small lane shift
        wm = jnp.maximum(wm, hm[:, off:off + wmax_len])

    # Compact the PH pooled-row windows into contiguous 128-aligned lane blocks
    # (pure vreg selection: both i*rs and row_lanes are multiples of 128).
    rs = MSH * SH * w_pad
    rows = [wm[:, i * rs:i * rs + row_lanes] for i in range(PH)]
    rows_cat = jnp.concatenate(rows, axis=1)            # (Cout_p, PH*row_lanes)
    # TODO(synk): for large PH move this unrolled compaction into a fori_loop + scratch.

    # Strided (i, j) subsample of every pooled row with ONE selection contraction
    # (garbage lanes in the padded columns are multiplied by 0, never max'ed into the
    # result), then ONE contiguous store.
    pooled = jnp.dot(rows_cat, sel_ref[...],
                     preferred_element_type=jnp.float32)  # (Cout_p, PH*PW)
    o_ref[0] = pooled.astype(o_ref.dtype)


def cnn_layer_pallas(x_nchw, weight_oihw, bias,
                     cnn_stride, mp_kernel, mp_stride,
                     conv_dtype=jnp.float32):
    """Forward pass of CNNLayer.  x is NCHW (PyTorch convention); returns NCHW."""
    N, Cin, H, W = x_nchw.shape
    Cout, _, KH, KW = weight_oihw.shape
    SH, SW = cnn_stride
    MKH, MKW = mp_kernel
    MSH, MSW = mp_stride

    OH = (H - KH) // SH + 1
    OW = (W - KW) // SW + 1
    PH = (OH - MKH) // MSH + 1
    PW = (OW - MKW) // MSW + 1

    # Stride-1 conv geometry (conv stride is folded into the pooling lane arithmetic).
    OH1 = H - KH + 1
    OW1 = W - KW + 1

    Cin_p = _round_up(Cin, SUBLANES)
    Cout_p = _round_up(Cout, SUBLANES)
    W_pad = _round_up(W, LANES)

    # Flat-lane geometry (all slice bounds are exact by construction).
    CS = MSW * SW                            # lane stride between pooled columns
    RS = MSH * SH * W_pad                    # lane stride between pooled rows
    row_lanes = _round_up((PW - 1) * CS + 1, LANES)
    wmax_len = (PH - 1) * RS + row_lanes
    hmax_len = wmax_len + (MKW - 1) * SW
    conv_len = hmax_len + (MKH - 1) * SH * W_pad
    x_len = (KH - 1) * W_pad + (KW - 1) + conv_len
    L = max(_round_up(x_len, LANES), H * W_pad)

    # Pooling never selects a padded/garbage conv row or column (static proof of the
    # review's correctness concern; a geometry change that violates this fails here).
    assert ((PH - 1) * MSH + MKH - 1) * SH <= OH1 - 1
    assert ((PW - 1) * MSW + MKW - 1) * SW <= OW1 - 1
    assert ((PW - 1) * MSW + MKW - 1) * SW < W_pad

    # ---- wrapper glue: pure layout plumbing (pads + free reshapes), no transpose ----
    x = jnp.pad(x_nchw.astype(jnp.float32),
                ((0, 0), (0, Cin_p - Cin), (0, 0), (0, W_pad - W)))
    x = x.reshape(N, Cin_p, H * W_pad)
    x = jnp.pad(x, ((0, 0), (0, 0), (0, L - H * W_pad)))

    K = KH * KW * Cin_p
    w = jnp.pad(weight_oihw.astype(jnp.float32),
                ((0, Cout_p - Cout), (0, Cin_p - Cin), (0, 0), (0, 0)))
    w2d = jnp.transpose(w, (0, 2, 3, 1)).reshape(Cout_p, K).astype(conv_dtype)
    b2 = jnp.pad(bias.astype(jnp.float32), (0, Cout_p - Cout)).reshape(Cout_p, 1)

    # 0/1 selection matrix: lane i*row_lanes + j*CS  ->  output lane i*PW + j.
    # Compile-time-constant pattern kept as a small resident VMEM input (constant
    # index_map): DMA'd once, no per-grid-step VPU work to regenerate it.
    rsel = (jnp.arange(PH)[:, None] * row_lanes
            + jnp.arange(PW)[None, :] * CS).reshape(-1)
    sel = jnp.zeros((PH * row_lanes, PH * PW), jnp.float32)
    sel = sel.at[rsel, jnp.arange(PH * PW)].set(1.0)

    kernel = functools.partial(
        _cnn_layer_kernel,
        cnn_kernel=(KH, KW), cnn_stride=(SH, SW),
        mp_kernel=(MKH, MKW), mp_stride=(MSH, MSW),
        w_pad=W_pad, conv_len=conv_len, hmax_len=hmax_len, wmax_len=wmax_len,
        row_lanes=row_lanes, pool_out=(PH, PW))

    # Explicit scoped-VMEM budget from the per-step buffers (+ headroom for the
    # double-buffered input/output DMA and compiler-managed temporaries).
    w_item = jnp.dtype(conv_dtype).itemsize
    est = (2 * Cin_p * L * 4                         # x block (double-buffered)
           + Cout_p * K * w_item + Cout_p * 4        # resident weights + bias
           + PH * row_lanes * PH * PW * 4            # resident selection matrix
           + 2 * Cout_p * PH * PW * 4                # output block
           + K * conv_len * (4 + w_item)             # im2col patches (+ bf16 copy)
           + 4 * Cout_p * conv_len * 4)              # conv / hm / wm / rows_cat temps
    vmem_limit = int(min(max(2 * est, 32 * 1024 * 1024), 64 * 1024 * 1024))

    out = pl.pallas_call(
        kernel,
        out_shape=jax.ShapeDtypeStruct((N, Cout_p, PH * PW), jnp.float32),
        grid_spec=pltpu.PrefetchScalarGridSpec(
            num_scalar_prefetch=0,
            grid=(N,),
            in_specs=[
                pl.BlockSpec((1, Cin_p, L), lambda n: (n, 0, 0)),
                pl.BlockSpec((Cout_p, K), lambda n: (0, 0)),
                pl.BlockSpec((Cout_p, 1), lambda n: (0, 0)),
                pl.BlockSpec((PH * row_lanes, PH * PW), lambda n: (0, 0)),
            ],
            out_specs=pl.BlockSpec((1, Cout_p, PH * PW), lambda n: (n, 0, 0)),
        ),
        compiler_params=pltpu.CompilerParams(
            dimension_semantics=("parallel",),
            vmem_limit_bytes=vmem_limit),
    )(x, w2d, b2, sel)

    # Row-major reshape is free; output is already NCHW -> no transpose HBM pass.
    out = out.reshape(N, Cout_p, PH, PW)
    return out[:, :Cout] if Cout != Cout_p else out


def cnn_layer_reference(x_nchw, weight_oihw, bias,
                        cnn_stride, mp_kernel, mp_stride):
    """Pure-JAX reference matching torch.nn.Conv2d -> ReLU -> MaxPool2d."""
    y = jax.lax.conv_general_dilated(
        x_nchw.astype(jnp.float32), weight_oihw.astype(jnp.float32),
        window_strides=cnn_stride, padding='VALID',
        dimension_numbers=('NCHW', 'OIHW', 'NCHW'))
    y = y + bias.astype(jnp.float32)[None, :, None, None]
    y = jnp.maximum(y, 0.0)
    y = jax.lax.reduce_window(
        y, -jnp.inf, jax.lax.max,
        window_dimensions=(1, 1) + tuple(mp_kernel),
        window_strides=(1, 1) + tuple(mp_stride),
        padding='VALID')
    return y


if __name__ == "__main__":
    # CNNLayer(in_channels=4, out_channels=8, cnn_kernel_size=(3, 3),
    #          cnn_stride=(1, 1), mp_kernel_size=(2, 2), mp_stride=(2, 2))
    in_channels, out_channels = 4, 8
    cnn_kernel_size, cnn_stride = (3, 3), (1, 1)
    mp_kernel_size, mp_stride = (2, 2), (2, 2)
    batch, height, width = 2, 16, 16

    key = jax.random.PRNGKey(0)
    kx, kw, kb = jax.random.split(key, 3)
    x = jax.random.normal(kx, (batch, in_channels, height, width), jnp.float32)
    weight = 0.1 * jax.random.normal(
        kw, (out_channels, in_channels) + cnn_kernel_size, jnp.float32)
    bias = 0.1 * jax.random.normal(kb, (out_channels,), jnp.float32)

    ref = cnn_layer_reference(x, weight, bias, cnn_stride, mp_kernel_size, mp_stride)

    # f32 MXU operands: tight tolerance.
    out = cnn_layer_pallas(x, weight, bias, cnn_stride, mp_kernel_size, mp_stride)
    out = jax.block_until_ready(out)
    assert out.shape == ref.shape, (out.shape, ref.shape)
    assert jnp.allclose(out, ref, atol=1e-4, rtol=1e-4), \
        float(jnp.max(jnp.abs(out - ref)))

    # bf16 MXU operands (v6e/v7x fast path), f32 accumulate: looser tolerance.
    out_bf16 = cnn_layer_pallas(x, weight, bias, cnn_stride, mp_kernel_size,
                                mp_stride, conv_dtype=jnp.bfloat16)
    out_bf16 = jax.block_until_ready(out_bf16)
    assert jnp.allclose(out_bf16, ref, atol=3e-2, rtol=3e-2), \
        float(jnp.max(jnp.abs(out_bf16 - ref)))

    # Second geometry: conv stride 2, channel counts not multiples of 8 (exercises
    # the stride folding and the Cout un-pad path).
    x2 = jax.random.normal(jax.random.PRNGKey(1), (1, 3, 16, 16), jnp.float32)
    w2 = 0.1 * jax.random.normal(jax.random.PRNGKey(2), (5, 3, 3, 3), jnp.float32)
    b2v = 0.1 * jax.random.normal(jax.random.PRNGKey(3), (5,), jnp.float32)
    out2 = cnn_layer_pallas(x2, w2, b2v, (2, 2), (2, 2), (2, 2))
    out2 = jax.block_until_ready(out2)
    ref2 = cnn_layer_reference(x2, w2, b2v, (2, 2), (2, 2), (2, 2))
    assert out2.shape == ref2.shape, (out2.shape, ref2.shape)
    assert jnp.allclose(out2, ref2, atol=1e-4, rtol=1e-4), \
        float(jnp.max(jnp.abs(out2 - ref2)))

    print("KERNEL_OK")
</pallas_src>

<mosaic_0001>
module attributes {stable_mosaic.version = 11 : i64} {
  func.func @_cnn_layer_kernel(%arg0: i32, %arg1: memref<1x8x2176xf32, #tpu.memory_space<vmem>>, %arg2: memref<8x72xf32, #tpu.memory_space<vmem>>, %arg3: memref<8x1xf32, #tpu.memory_space<vmem>>, %arg4: memref<896x49xf32, #tpu.memory_space<vmem>>, %arg5: memref<1x8x49xf32, #tpu.memory_space<vmem>>) attributes {dimension_semantics = [#tpu.dimension_semantics<parallel>], iteration_bounds = array<i64: 2>, scalar_prefetch = 0 : i64, scratch_operands = 0 : i64, tpu.core_type = #tpu.core_type<tc>, window_params = [{transform_indices = @transform_0, window_bounds = array<i64: 1, 8, 2176>}, {pipeline_mode = #tpu.pipeline_mode<synchronous>, transform_indices = @transform_1, window_bounds = array<i64: 8, 72>}, {pipeline_mode = #tpu.pipeline_mode<synchronous>, transform_indices = @transform_2, window_bounds = array<i64: 8, 1>}, {pipeline_mode = #tpu.pipeline_mode<synchronous>, transform_indices = @transform_3, window_bounds = array<i64: 896, 49>}, {transform_indices = @transform_4, window_bounds = array<i64: 1, 8, 49>}]} {
    %c0 = arith.constant 0 : index
    %c0_0 = arith.constant 0 : index
    %c0_1 = arith.constant 0 : index
    %0 = vector.load %arg1[%c0, %c0_0, %c0_1] : memref<1x8x2176xf32, #tpu.memory_space<vmem>>, vector<1x8x2176xf32>
    %1 = vector.shape_cast %0 : vector<1x8x2176xf32> to vector<8x2176xf32>
    %2 = vector.extract_strided_slice %1 {offsets = [0, 0], sizes = [8, 1793], strides = [1, 1]} : vector<8x2176xf32> to vector<8x1793xf32>
    %3 = vector.extract_strided_slice %1 {offsets = [0, 1], sizes = [8, 1793], strides = [1, 1]} : vector<8x2176xf32> to vector<8x1793xf32>
    %4 = vector.extract_strided_slice %1 {offsets = [0, 2], sizes = [8, 1793], strides = [1, 1]} : vector<8x2176xf32> to vector<8x1793xf32>
    %5 = vector.extract_strided_slice %1 {offsets = [0, 128], sizes = [8, 1793], strides = [1, 1]} : vector<8x2176xf32> to vector<8x1793xf32>
    %6 = vector.extract_strided_slice %1 {offsets = [0, 129], sizes = [8, 1793], strides = [1, 1]} : vector<8x2176xf32> to vector<8x1793xf32>
    %7 = vector.extract_strided_slice %1 {offsets = [0, 130], sizes = [8, 1793], strides = [1, 1]} : vector<8x2176xf32> to vector<8x1793xf32>
    %8 = vector.extract_strided_slice %1 {offsets = [0, 256], sizes = [8, 1793], strides = [1, 1]} : vector<8x2176xf32> to vector<8x1793xf32>
    %9 = vector.extract_strided_slice %1 {offsets = [0, 257], sizes = [8, 1793], strides = [1, 1]} : vector<8x2176xf32> to vector<8x1793xf32>
    %10 = vector.extract_strided_slice %1 {offsets = [0, 258], sizes = [8, 1793], strides = [1, 1]} : vector<8x2176xf32> to vector<8x1793xf32>
    %11 = tpu.concatenate %2, %3, %4, %5, %6, %7, %8, %9, %10 in 0 : vector<8x1793xf32>, vector<8x1793xf32>, vector<8x1793xf32>, vector<8x1793xf32>, vector<8x1793xf32>, vector<8x1793xf32>, vector<8x1793xf32>, vector<8x1793xf32>, vector<8x1793xf32> -> vector<72x1793xf32>
    %c0_2 = arith.constant 0 : index
    %c0_3 = arith.constant 0 : index
    %12 = vector.load %arg2[%c0_2, %c0_3] : memref<8x72xf32, #tpu.memory_space<vmem>>, vector<8x72xf32>
    %cst = arith.constant dense<0.000000e+00> : vector<8x1793xf32>
    %13 = tpu.matmul %12, %11, %cst {dimension_numbers = #tpu.dot_dimension_numbers<[1], [0], [0], [1], [0, 0, 1, 1], [], []>} : vector<8x72xf32>, vector<72x1793xf32>, vector<8x1793xf32> -> vector<8x1793xf32>
    %c0_4 = arith.constant 0 : index
    %c0_5 = arith.constant 0 : index
    %14 = vector.load %arg3[%c0_4, %c0_5] : memref<8x1xf32, #tpu.memory_space<vmem>>, vector<8x1xf32>
    %15 = vector.broadcast %14 : vector<8x1xf32> to vector<8x1793xf32>
    %16 = arith.addf %13, %15 : vector<8x1793xf32>
    %cst_6 = arith.constant 0.000000e+00 : f32
    %17 = vector.broadcast %cst_6 : f32 to vector<8x1793xf32>
    %18 = arith.maximumf %16, %17 : vector<8x1793xf32>
    %19 = vector.extract_strided_slice %18 {offsets = [0, 0], sizes = [8, 1665], strides = [1, 1]} : vector<8x1793xf32> to vector<8x1665xf32>
    %20 = vector.extract_strided_slice %18 {offsets = [0, 128], sizes = [8, 1665], strides = [1, 1]} : vector<8x1793xf32> to vector<8x1665xf32>
    %21 = arith.maximumf %19, %20 : vector<8x1665xf32>
    %22 = vector.extract_strided_slice %21 {offsets = [0, 0], sizes = [8, 1664], strides = [1, 1]} : vector<8x1665xf32> to vector<8x1664xf32>
    %23 = vector.extract_strided_slice %21 {offsets = [0, 1], sizes = [8, 1664], strides = [1, 1]} : vector<8x1665xf32> to vector<8x1664xf32>
    %24 = arith.maximumf %22, %23 : vector<8x1664xf32>
    %25 = vector.extract_strided_slice %24 {offsets = [0, 0], sizes = [8, 128], strides = [1, 1]} : vector<8x1664xf32> to vector<8x128xf32>
    %26 = vector.extract_strided_slice %24 {offsets = [0, 256], sizes = [8, 128], strides = [1, 1]} : vector<8x1664xf32> to vector<8x128xf32>
    %27 = vector.extract_strided_slice %24 {offsets = [0, 512], sizes = [8, 128], strides = [1, 1]} : vector<8x1664xf32> to vector<8x128xf32>
    %28 = vector.extract_strided_slice %24 {offsets = [0, 768], sizes = [8, 128], strides = [1, 1]} : vector<8x1664xf32> to vector<8x128xf32>
    %29 = vector.extract_strided_slice %24 {offsets = [0, 1024], sizes = [8, 128], strides = [1, 1]} : vector<8x1664xf32> to vector<8x128xf32>
    %30 = vector.extract_strided_slice %24 {offsets = [0, 1280], sizes = [8, 128], strides = [1, 1]} : vector<8x1664xf32> to vector<8x128xf32>
    %31 = vector.extract_strided_slice %24 {offsets = [0, 1536], sizes = [8, 128], strides = [1, 1]} : vector<8x1664xf32> to vector<8x128xf32>
    %32 = tpu.concatenate %25, %26, %27, %28, %29, %30, %31 in 1 : vector<8x128xf32>, vector<8x128xf32>, vector<8x128xf32>, vector<8x128xf32>, vector<8x128xf32>, vector<8x128xf32>, vector<8x128xf32> -> vector<8x896xf32>
    %c0_7 = arith.constant 0 : index
    %c0_8 = arith.constant 0 : index
    %33 = vector.load %arg4[%c0_7, %c0_8] : memref<896x49xf32, #tpu.memory_space<vmem>>, vector<896x49xf32>
    %cst_9 = arith.constant dense<0.000000e+00> : vector<8x49xf32>
    %34 = tpu.matmul %32, %33, %cst_9 {dimension_numbers = #tpu.dot_dimension_numbers<[1], [0], [0], [1], [0, 0, 1, 1], [], []>} : vector<8x896xf32>, vector<896x49xf32>, vector<8x49xf32> -> vector<8x49xf32>
    %c0_10 = arith.constant 0 : index
    %c0_11 = arith.constant 0 : index
    %c0_12 = arith.constant 0 : index
    %35 = vector.load %arg5[%c0_10, %c0_11, %c0_12] : memref<1x8x49xf32, #tpu.memory_space<vmem>>, vector<1x8x49xf32>
    %36 = vector.shape_cast %35 : vector<1x8x49xf32> to vector<8x49xf32>
    %37 = vector.shape_cast %34 : vector<8x49xf32> to vector<1x8x49xf32>
    tpu.vector_store %arg5[%c0_10, %c0_11, %c0_12], %37 {strides = array<i32>} : memref<1x8x49xf32, #tpu.memory_space<vmem>>, vector<1x8x49xf32>,
    return
  }
  func.func @transform_0(%arg0: i32) -> (i32, i32, i32) {
    %c0_i32 = arith.constant 0 : i32
    %c0_i32_0 = arith.constant 0 : i32
    %c0_i32_1 = arith.constant 0 : i32
    return %arg0, %c0_i32, %c0_i32_0 : i32, i32, i32
  }
  func.func @transform_1(%arg0: i32) -> (i32, i32) {
    %c0_i32 = arith.constant 0 : i32
    %c0_i32_0 = arith.constant 0 : i32
    %c0_i32_1 = arith.constant 0 : i32
    return %c0_i32, %c0_i32_0 : i32, i32
  }
  func.func @transform_2(%arg0: i32) -> (i32, i32) {
    %c0_i32 = arith.constant 0 : i32
    %c0_i32_0 = arith.constant 0 : i32
    %c0_i32_1 = arith.constant 0 : i32
    return %c0_i32, %c0_i32_0 : i32, i32
  }
  func.func @transform_3(%arg0: i32) -> (i32, i32) {
    %c0_i32 = arith.constant 0 : i32
    %c0_i32_0 = arith.constant 0 : i32
    %c0_i32_1 = arith.constant 0 : i32
    return %c0_i32, %c0_i32_0 : i32, i32
  }
  func.func @transform_4(%arg0: i32) -> (i32, i32, i32) {
    %c0_i32 = arith.constant 0 : i32
    %c0_i32_0 = arith.constant 0 : i32
    %c0_i32_1 = arith.constant 0 : i32
    return %arg0, %c0_i32, %c0_i32_0 : i32, i32, i32
  }
}

</mosaic_0001>

<llo_original>
// kernel: tpu_custom_call.1
$region0: #{tpu_custom_call.1}
  #allocation0 [shape = 'u32[]', space=smem, size = 0x4, offset = 0x4, fixed_abs, tag = 'smem constant byte address 0x4 - core index']
  #allocation1 [shape = 'u32[144,128]{1,0:T(1,128)}', space=vmem, size = 0x12000, scoped, tag = 'internal scratch']
  %s0 = inlined_call_operand.vmem [shape: f32[2,8,2176], index: 0, kind: input, shape index: {}]
  %s1 = inlined_call_operand.vmem [shape: f32[8,72], index: 1, kind: input, shape index: {}]
  %s2 = inlined_call_operand.vmem [shape: f32[8,1], index: 2, kind: input, shape index: {}]
  %s3 = inlined_call_operand.vmem [shape: f32[896,49], index: 3, kind: input, shape index: {}]
  %s4 = inlined_call_operand.hbm [shape: f32[2,8,49], index: 4, kind: output, shape index: {}]
  %s5 = sld [smem:[#allocation0]]
  $region49: #{tpu_custom_call.1} parent=0
    _
  %s7 = ssub.s32 1, %s5
  %s8 = scalar_select 0, %s7, %s5
  $region1: #{tpu_custom_call.1} parent=0
    #allocation2 [shape = 'u8[8192]{0}', space=vmem, size = 0x2000, scoped, tag = 'output window, operand 0']
    #allocation3 [shape = 's32[2]{0}', space=sflag, size = 0x8, scoped, tag = 'scoped memory for tpu_custom_call.1']
    %9 = vsyncpa [#allocation3], 0
    %s10 = scalar_lea.sflag [#allocation3], 1
    %11 = vsyncpa %s10, 0
    loop: start=0, step=1, limit=4
    $region2: #{tpu_custom_call.1} parent=1 // loop_pre_header
      _
    $region3: #{tpu_custom_call.1} parent=1 // loop_header
      %s13 = sphi 0, %s17
      %p14 = scmp.ge.s32.totalorder %s13, 4
      %s23 = sphi 0, %s25
      %s26 = sphi 0, %s23
      %s27 = sphi 0, %s26
      %s43 = sphi 0, %s27
      %s47 = sphi 0, %s47
      %s49 = sphi 0, %s47
      %s50 = sphi 0, %s49
      %s64 = sphi 0, %s50
      %s68 = sphi 0, %s68
      %s70 = sphi 0, %s68
      %s71 = sphi 0, %s70
      %s85 = sphi 0, %s71
      %s89 = sphi 0, %s89
      %s91 = sphi 0, %s89
      %s92 = sphi 0, %s91
      %s106 = sphi 0, %s92
      %s112 = sphi 0, %s114
      %s115 = sphi 0, %s112
      %s116 = sphi 0, %s115
      %s132 = sphi 0, %s116
    $region4: #{tpu_custom_call.1} parent=1 // loop_header_branch
      %16 = sbr.rel (%p14) target = $region8
    $region5: #{tpu_custom_call.1} parent=1 // loop_body
      %s18 = ssub.s32 %s13, 1
      %s19 = ssub.s32 %s13, 2
      %s20 = sadd.s32 %s13, 1
      %s21 = ssub.s32 %s13, %s20
      %p22 = scmp.eq.s32.totalorder %s21, 0
      %s24 = sadd.s32 %s23, 1
      %s25 = scalar_select %p22, %s23, %s24
      %p28 = pneg %p22
      %p29 = scmp.eq.s32.totalorder %s13, 1
      %p30 = por %p28, %p29
      %p31 = scmp.ne.s32.totalorder %s23, %s26
      %p32 = scmp.eq.s32.totalorder %s13, 0
      %p33 = por %p31, %p32
      %p34 = scmp.ne.s32.totalorder %s23, %s26
      %p35 = scmp.eq.s32.totalorder %s18, 1
      %p36 = por %p34, %p35
      %p37 = scmp.ne.s32.totalorder %s26, %s27
      %p38 = scmp.eq.s32.totalorder %s18, 0
      %p39 = por %p37, %p38
      %p40 = scmp.ne.s32.totalorder %s26, %s27
      %p41 = scmp.eq.s32.totalorder %s19, 1
      %p42 = por %p40, %p41
      %p44 = scmp.ne.s32.totalorder %s27, %s43
      %p45 = scmp.eq.s32.totalorder %s19, 0
      %p46 = por %p44, %p45
      %s48 = sadd.s32 %s47, 1
      %p51 = scmp.eq.s32.totalorder %s13, 1
      %p52 = scmp.ne.s32.totalorder %s47, %s49
      %p53 = scmp.eq.s32.totalorder %s13, 0
      %p54 = por %p52, %p53
      %p55 = scmp.ne.s32.totalorder %s47, %s49
      %p56 = scmp.eq.s32.totalorder %s18, 1
      %p57 = por %p55, %p56
      %p58 = scmp.ne.s32.totalorder %s49, %s50
      %p59 = scmp.eq.s32.totalorder %s18, 0
      %p60 = por %p58, %p59
      %p61 = scmp.ne.s32.totalorder %s49, %s50
      %p62 = scmp.eq.s32.totalorder %s19, 1
      %p63 = por %p61, %p62
      %p65 = scmp.ne.s32.totalorder %s50, %s64
      %p66 = scmp.eq.s32.totalorder %s19, 0
      %p67 = por %p65, %p66
      %s69 = sadd.s32 %s68, 1
      %p72 = scmp.eq.s32.totalorder %s13, 1
      %p73 = scmp.ne.s32.totalorder %s68, %s70
      %p74 = scmp.eq.s32.totalorder %s13, 0
      %p75 = por %p73, %p74
      %p76 = scmp.ne.s32.totalorder %s68, %s70
      %p77 = scmp.eq.s32.totalorder %s18, 1
      %p78 = por %p76, %p77
      %p79 = scmp.ne.s32.totalorder %s70, %s71
      %p80 = scmp.eq.s32.totalorder %s18, 0
      %p81 = por %p79, %p80
      %p82 = scmp.ne.s32.totalorder %s70, %s71
      %p83 = scmp.eq.s32.totalorder %s19, 1
      %p84 = por %p82, %p83
      %p86 = scmp.ne.s32.totalorder %s71, %s85
      %p87 = scmp.eq.s32.totalorder %s19, 0
      %p88 = por %p86, %p87
      %s90 = sadd.s32 %s89, 1
      %p93 = scmp.eq.s32.totalorder %s13, 1
      %p94 = scmp.ne.s32.totalorder %s89, %s91
      %p95 = scmp.eq.s32.totalorder %s13, 0
      %p96 = por %p94, %p95
      %p97 = scmp.ne.s32.totalorder %s89, %s91
      %p98 = scmp.eq.s32.totalorder %s18, 1
      %p99 = por %p97, %p98
      %p100 = scmp.ne.s32.totalorder %s91, %s92
      %p101 = scmp.eq.s32.totalorder %s18, 0
      %p102 = por %p100, %p101
      %p103 = scmp.ne.s32.totalorder %s91, %s92
      %p104 = scmp.eq.s32.totalorder %s19, 1
      %p105 = por %p103, %p104
      %p107 = scmp.ne.s32.totalorder %s92, %s106
      %p108 = scmp.eq.s32.totalorder %s19, 0
      %p109 = por %p107, %p108
      %s110 = ssub.s32 %s13, %s20
      %p111 = scmp.eq.s32.totalorder %s110, 0
      %s113 = sadd.s32 %s112, 1
      %s114 = scalar_select %p111, %s112, %s113
      %p117 = pneg %p111
      %p118 = scmp.eq.s32.totalorder %s13, 1
      %p119 = por %p117, %p118
      %p120 = scmp.ne.s32.totalorder %s112, %s115
      %p121 = scmp.eq.s32.totalorder %s13, 0
      %p122 = por %p120, %p121
      %p123 = scmp.ne.s32.totalorder %s112, %s115
      %p124 = scmp.eq.s32.totalorder %s18, 1
      %p125 = por %p123, %p124
      %p126 = scmp.ne.s32.totalorder %s115, %s116
      %p127 = scmp.eq.s32.totalorder %s18, 0
      %p128 = por %p126, %p127
      %p129 = scmp.ne.s32.totalorder %s115, %s116
      %p130 = scmp.eq.s32.totalorder %s19, 1
      %p131 = por %p129, %p130
      %p133 = scmp.ne.s32.totalorder %s116, %s132
      %p134 = scmp.eq.s32.totalorder %s19, 0
      %p135 = por %p133, %p134
      %p136 = scmp.le.s32.totalorder 1, %s13
      %p137 = scmp.lt.s32.totalorder %s13, 3
      %p138 = pnand %p136, %p137
      %p139 = pneg %p138
      // Predicated region
      $region9: #{tpu_custom_call.1} parent=5 // pred_check
        _
      $region10: #{tpu_custom_call.1} parent=5 // pred_check_branch
        %141 = sbr.rel (%p138) target = $region12
      $region11: #{tpu_custom_call.1} parent=5 // pred_region
        %s142 = ssub.s32 %s13, 1
        // Predicated region
        $region13: #{tpu_custom_call.1} parent=11 // pred_check
          %p143 = pneg %p60
        $region14: #{tpu_custom_call.1} parent=11 // pred_check_branch
          %145 = sbr.rel (%p143) target = $region16
        $region15: #{tpu_custom_call.1} parent=11 // pred_region
          _
        $region16: #{tpu_custom_call.1} parent=11 // pred_fallthru
          _
        // Predicated region
        $region17: #{tpu_custom_call.1} parent=11 // pred_check
          %p146 = pneg %p81
        $region18: #{tpu_custom_call.1} parent=11 // pred_check_branch
          %148 = sbr.rel (%p146) target = $region20
        $region19: #{tpu_custom_call.1} parent=11 // pred_region
          _
        $region20: #{tpu_custom_call.1} parent=11 // pred_fallthru
          _
        // Predicated region
        $region21: #{tpu_custom_call.1} parent=11 // pred_check
          %p149 = pneg %p102
        $region22: #{tpu_custom_call.1} parent=11 // pred_check_branch
          %151 = sbr.rel (%p149) target = $region24
        $region23: #{tpu_custom_call.1} parent=11 // pred_region
          _
        $region24: #{tpu_custom_call.1} parent=11 // pred_fallthru
          _
      $region12: #{tpu_custom_call.1} parent=5 // pred_fallthru
        _
      %p152 = scmp.lt.s32.totalorder %s13, 2
      // Predicated region
      $region25: #{tpu_custom_call.1} parent=5 // pred_check
        %p153 = pneg %p152
      $region26: #{tpu_custom_call.1} parent=5 // pred_check_branch
        %155 = sbr.rel (%p153) target = $region28
      $region27: #{tpu_custom_call.1} parent=5 // pred_region
        // Predicated region
        $region29: #{tpu_custom_call.1} parent=27 // pred_check
          %p156 = pneg %p33
        $region30: #{tpu_custom_call.1} parent=27 // pred_check_branch
          %158 = sbr.rel (%p156) target = $region32
        $region31: #{tpu_custom_call.1} parent=27 // pred_region
          %p159 = scmp.lt.s32.totalorder %s13, 1
          %s160 = scalar_select %p159, %s13, 1
          %s161 = smul.addr %s160, 17
          %s162 = smul.addr %s161, 8
          %s163 = scalar_lea.vmem %s0, %s162
        $region32: #{tpu_custom_call.1} parent=27 // pred_fallthru
          _
      $region28: #{tpu_custom_call.1} parent=5 // pred_fallthru
        _
      %p164 = scmp.le.s32.totalorder 1, %s13
      %p165 = scmp.lt.s32.totalorder %s13, 3
      %p166 = pnand %p164, %p165
      %p167 = pneg %p166
      // Predicated region
      $region33: #{tpu_custom_call.1} parent=5 // pred_check
        _
      $region34: #{tpu_custom_call.1} parent=5 // pred_check_branch
        %169 = sbr.rel (%p166) target = $region36
      $region35: #{tpu_custom_call.1} parent=5 // pred_region
        %s170 = ssub.s32 %s13, 1
        %p171 = scmp.lt.s32.totalorder %s18, 1
        %s172 = scalar_select %p171, %s18, 1
        %s173 = smul.addr %s172, 17
        %s174 = smul.addr %s173, 8
        %s175 = scalar_lea.vmem %s0, %s174
        %p176 = pneg %p39
        %p177 = pneg %p36
        %p178 = pneg %p60
        %p179 = pneg %p57
        %p180 = pneg %p81
        %p181 = pneg %p78
        %p182 = pneg %p102
        %p183 = pneg %p99
        %p184 = pneg %p128
        %p185 = pneg %p125
        %s186 = sand.u32 %s115, 1
        %s187 = scalar_lea.sflag [#allocation3], %s186
        %s188 = sand.u32 %s115, 1
        %s189 = smul.addr %s188, 8
        %s190 = scalar_lea.vmem [#allocation2], %s189
        %p191 = scmp.lt.s32.totalorder %s18, 1
        %s192 = scalar_select %p191, %s18, 1
        %s193 = smul.addr %s192, 17
        %s194 = smul.addr %s193, 8
        %s195 = scalar_lea.vmem %s0, %s194
        %v196 = vld [vmem:[%s195] sm:$0xff]
        %v197 = vld [vmem:[%s195 + $0x8] sm:$0xff]
        %v198 = vld [vmem:[%s195 + $0x10] sm:$0xff]
        %v199 = vld [vmem:[%s195 + $0x18] sm:$0xff]
        %v200 = vld [vmem:[%s195 + $0x20] sm:$0xff]
        %v201 = vld [vmem:[%s195 + $0x28] sm:$0xff]
        %v202 = vld [vmem:[%s195 + $0x30] sm:$0xff]
        %v203 = vld [vmem:[%s195 + $0x38] sm:$0xff]
        %v204 = vld [vmem:[%s195 + $0x40] sm:$0xff]
        %v205 = vld [vmem:[%s195 + $0x48] sm:$0xff]
        %v206 = vld [vmem:[%s195 + $0x50] sm:$0xff]
        %v207 = vld [vmem:[%s195 + $0x58] sm:$0xff]
        %v208 = vld [vmem:[%s195 + $0x60] sm:$0xff]
        %v209 = vld [vmem:[%s195 + $0x68] sm:$0xff]
        %v210 = vld [vmem:[%s195 + $0x70] sm:$0xff]
        %v211 = vld [vmem:[%s195 + $0x78] sm:$0xff]
        %v212 = vld [vmem:[%s195 + $0x80] sm:$0xff]
        %228 = vrot.lane.b32.xlu0 %v196, 127
        %v229 = vpop.permute.xlu0 %228
        %230 = vrot.lane.b32.xlu0 %v197, 127
        %v231 = vpop.permute.xlu0 %230
        %232 = vrot.lane.b32.xlu0 %v198, 127
        %v233 = vpop.permute.xlu0 %232
        %234 = vrot.lane.b32.xlu0 %v199, 127
        %v235 = vpop.permute.xlu0 %234
        %236 = vrot.lane.b32.xlu0 %v200, 127
        %v237 = vpop.permute.xlu0 %236
        %238 = vrot.lane.b32.xlu0 %v201, 127
        %v239 = vpop.permute.xlu0 %238
        %240 = vrot.lane.b32.xlu0 %v202, 127
        %v241 = vpop.permute.xlu0 %240
        %242 = vrot.lane.b32.xlu0 %v203, 127
        %v243 = vpop.permute.xlu0 %242
        %244 = vrot.lane.b32.xlu0 %v204, 127
        %v245 = vpop.permute.xlu0 %244
        %246 = vrot.lane.b32.xlu0 %v205, 127
        %v247 = vpop.permute.xlu0 %246
        %248 = vrot.lane.b32.xlu0 %v206, 127
        %v249 = vpop.permute.xlu0 %248
        %250 = vrot.lane.b32.xlu0 %v207, 127
        %v251 = vpop.permute.xlu0 %250
        %252 = vrot.lane.b32.xlu0 %v208, 127
        %v253 = vpop.permute.xlu0 %252
        %254 = vrot.lane.b32.xlu0 %v209, 127
        %v255 = vpop.permute.xlu0 %254
        %256 = vrot.lane.b32.xlu0 %v210, 127
        %v257 = vpop.permute.xlu0 %256
        %vm258 = vcmask 1039360
        %v259 = vsel %vm258, %v229, %v231
        %v260 = vsel %vm258, %v231, %v233
        %v261 = vsel %vm258, %v233, %v235
        %v262 = vsel %vm258, %v235, %v237
        %v263 = vsel %vm258, %v237, %v239
        %v264 = vsel %vm258, %v239, %v241
        %v265 = vsel %vm258, %v241, %v243
        %v266 = vsel %vm258, %v243, %v245
        %v267 = vsel %vm258, %v245, %v247
        %v268 = vsel %vm258, %v247, %v249
        %v269 = vsel %vm258, %v249, %v251
        %v270 = vsel %vm258, %v251, %v253
        %v271 = vsel %vm258, %v253, %v255
        %v272 = vsel %vm258, %v255, %v257
        %288 = vrot.lane.b32.xlu0 %v196, 126
        %v289 = vpop.permute.xlu0 %288
        %290 = vrot.lane.b32.xlu0 %v197, 126
        %v291 = vpop.permute.xlu0 %290
        %292 = vrot.lane.b32.xlu0 %v198, 126
        %v293 = vpop.permute.xlu0 %292
        %294 = vrot.lane.b32.xlu0 %v199, 126
        %v295 = vpop.permute.xlu0 %294
        %296 = vrot.lane.b32.xlu0 %v200, 126
        %v297 = vpop.permute.xlu0 %296
        %298 = vrot.lane.b32.xlu0 %v201, 126
        %v299 = vpop.permute.xlu0 %298
        %300 = vrot.lane.b32.xlu0 %v202, 126
        %v301 = vpop.permute.xlu0 %300
        %302 = vrot.lane.b32.xlu0 %v203, 126
        %v303 = vpop.permute.xlu0 %302
        %304 = vrot.lane.b32.xlu0 %v204, 126
        %v305 = vpop.permute.xlu0 %304
        %306 = vrot.lane.b32.xlu0 %v205, 126
        %v307 = vpop.permute.xlu0 %306
        %308 = vrot.lane.b32.xlu0 %v206, 126
        %v309 = vpop.permute.xlu0 %308
        %310 = vrot.lane.b32.xlu0 %v207, 126
        %v311 = vpop.permute.xlu0 %310
        %312 = vrot.lane.b32.xlu0 %v208, 126
        %v313 = vpop.permute.xlu0 %312
        %314 = vrot.lane.b32.xlu0 %v209, 126
        %v315 = vpop.permute.xlu0 %314
        %316 = vrot.lane.b32.xlu0 %v210, 126
        %v317 = vpop.permute.xlu0 %316
        %vm318 = vcmask 1031168
        %v319 = vsel %vm318, %v289, %v291
        %v320 = vsel %vm318, %v291, %v293
        %v321 = vsel %vm318, %v293, %v295
        %v322 = vsel %vm318, %v295, %v297
        %v323 = vsel %vm318, %v297, %v299
        %v324 = vsel %vm318, %v299, %v301
        %v325 = vsel %vm318, %v301, %v303
        %v326 = vsel %vm318, %v303, %v305
        %v327 = vsel %vm318, %v305, %v307
        %v328 = vsel %vm318, %v307, %v309
        %v329 = vsel %vm318, %v309, %v311
        %v330 = vsel %vm318, %v311, %v313
        %v331 = vsel %vm318, %v313, %v315
        %v332 = vsel %vm318, %v315, %v317
        %349 = vrot.lane.b32.xlu0 %v211, 127
        %v350 = vpop.permute.xlu0 %349
        %v351 = vsel %vm258, %v257, %v350
        %354 = vrot.lane.b32.xlu0 %v211, 126
        %v355 = vpop.permute.xlu0 %354
        %v356 = vsel %vm318, %v317, %v355
        %360 = vrot.lane.b32.xlu0 %v212, 127
        %v361 = vpop.permute.xlu0 %360
        %v362 = vsel %vm258, %v350, %v361
        %365 = vrot.lane.b32.xlu0 %v212, 126
        %v366 = vpop.permute.xlu0 %365
        %v367 = vsel %vm318, %v355, %v366
        %v370 = vld [vmem:[%s1] sm:$0xff]
        %v371 = vld [vmem:[%s2] sm:$0xff]
        %373 = vset.pattern.permute.xlu0 0
        %374 = vperm.xlu0 %373, %v371
        %v375 = vpop.permute.xlu0 %374
        %vm377 = vcmask 588800
        %v379 = vsel %vm377, %v370, 0
        %381 = vmatprep.subr.mxu0 %v197
        %382 = vmatpush1.msra.mxu0 %v196
        %383 = vmatprep.subr.mxu0 %v260
        %384 = vmatpush1.msra.mxu0 %v259
        %385 = vmatprep.subr.mxu0 %v320
        %386 = vmatpush1.msra.mxu0 %v319
        %387 = vmatprep.subr.mxu0 %v198
        %388 = vmatpush1.msra.mxu0 %v197
        %389 = vmatprep.subr.mxu0 %v261
        %390 = vmatpush1.msra.mxu0 %v260
        %391 = vmatprep.subr.mxu0 %v321
        %392 = vmatpush1.msra.mxu0 %v320
        %393 = vmatprep.subr.mxu0 %v199
        %394 = vmatpush1.msra.mxu0 %v198
        %395 = vmatprep.subr.mxu0 %v262
        %396 = vmatpush1.msra.mxu0 %v261
        %397 = vmatprep.subr.mxu0 %v322
        %398 = vmatpush1.msra.mxu0 %v321
        %399 = vmatprep.subr.mxu0 0.0
        %400 = vmatpush1.msra.mxu0 0.0
        %401 = vmatprep.subr.mxu0 0.0
        %402 = vmatpush1.msra.mxu0 0.0
        %403 = vmatprep.subr.mxu0 0.0
        %404 = vmatpush1.msra.mxu0 0.0
        %405 = vmatprep.subr.mxu0 0.0
        %406 = vmatpush1.msra.mxu0 0.0
        %407 = vmatprep.subr.mxu0 0.0
        %408 = vmatpush1.msra.mxu0 0.0
        %409 = vmatprep.subr.mxu0 0.0
        %410 = vmatpush1.msra.mxu0 0.0
        %411 = vmatprep.subr.mxu0 0.0
        %412 = vmatpush1.msra.mxu0 0.0
        %413 = vmatprep.subr.mxu0 0.0
        %414 = vmatpush1.msra.mxu0 0.0
        %415 = vmatprep.subr.mxu0 0.0
        %416 = vmatpush1.msra.mxu0 0.0
        %417 = vmatprep.subr.mxu0 0.0
        %418 = vmatpush1.msra.mxu0 0.0
        %419 = vmatprep.subr.mxu0 0.0
        %420 = vmatpush1.msra.mxu0 0.0
        %421 = vmatprep.subr.mxu0 0.0
        %422 = vmatpush1.msra.mxu0 0.0
        %423 = vmatprep.subr.mxu0 0.0
        %424 = vmatpush1.msra.mxu0 0.0
        %425 = vmatprep.subr.mxu0 0.0
        %426 = vmatpush1.msra.mxu0 0.0
        %427 = vmatprep.subr.mxu0 0.0
        %428 = vmatpush1.msra.mxu0 0.0
        %429 = vmatprep.subr.mxu0 0.0
        %430 = vmatpush1.msra.mxu0 0.0
        %431 = vmatprep.subr.mxu0 0.0
        %432 = vmatpush1.msra.mxu0 0.0
        %433 = vmatprep.subr.mxu0 0.0
        %434 = vmatpush1.msra.mxu0 0.0
        %435 = vmatprep.subr.mxu0 0.0
        %436 = vmatpush1.msra.mxu0 0.0
        %437 = vmatprep.subr.mxu0 0.0
        %438 = vmatpush1.msra.mxu0 0.0
        %439 = vmatprep.subr.mxu0 0.0
        %440 = vmatpush1.msra.mxu0 0.0
        %441 = vmatprep.subr.mxu0 0.0
        %442 = vmatpush1.msra.mxu0 0.0
        %443 = vmatprep.subr.mxu0 0.0
        %444 = vmatpush1.msra.mxu0 0.0
        %445 = vmatprep.mubr.f32.mxu0 0.0
        %446 = vmatmul.mubr.f32.gmra.mrb[0].mxu0 %v379
        %v447 = vpop.f32.mrb[0].mxu0
        %v448 = vadd.f32 %v375, %v447
        %v449 = vpop.f32.mrb[0].mxu0
        %v450 = vadd.f32 %v375, %v449
        %451 = vdwg.mxu0
        %452 = vmatprep.subr.mxu0 %v199
        %453 = vmatpush1.msra.mxu0 %v198
        %454 = vmatprep.subr.mxu0 %v262
        %455 = vmatpush1.msra.mxu0 %v261
        %456 = vmatprep.subr.mxu0 %v322
        %457 = vmatpush1.msra.mxu0 %v321
        %458 = vmatprep.subr.mxu0 %v200
        %459 = vmatpush1.msra.mxu0 %v199
        %460 = vmatprep.subr.mxu0 %v263
        %461 = vmatpush1.msra.mxu0 %v262
        %462 = vmatprep.subr.mxu0 %v323
        %463 = vmatpush1.msra.mxu0 %v322
        %464 = vmatprep.subr.mxu0 %v201
        %465 = vmatpush1.msra.mxu0 %v200
        %466 = vmatprep.subr.mxu0 %v264
        %467 = vmatpush1.msra.mxu0 %v263
        %468 = vmatprep.subr.mxu0 %v324
        %469 = vmatpush1.msra.mxu0 %v323
        %470 = vmatprep.subr.mxu0 0.0
        %471 = vmatpush1.msra.mxu0 0.0
        %472 = vmatprep.subr.mxu0 0.0
        %473 = vmatpush1.msra.mxu0 0.0
        %474 = vmatprep.subr.mxu0 0.0
        %475 = vmatpush1.msra.mxu0 0.0
        %476 = vmatprep.subr.mxu0 0.0
        %477 = vmatpush1.msra.mxu0 0.0
        %478 = vmatprep.subr.mxu0 0.0
        %479 = vmatpush1.msra.mxu0 0.0
        %480 = vmatprep.subr.mxu0 0.0
        %481 = vmatpush1.msra.mxu0 0.0
        %482 = vmatprep.subr.mxu0 0.0
        %483 = vmatpush1.msra.mxu0 0.0
        %484 = vmatprep.subr.mxu0 0.0
        %485 = vmatpush1.msra.mxu0 0.0
        %486 = vmatprep.subr.mxu0 0.0
        %487 = vmatpush1.msra.mxu0 0.0
        %488 = vmatprep.subr.mxu0 0.0
        %489 = vmatpush1.msra.mxu0 0.0
        %490 = vmatprep.subr.mxu0 0.0
        %491 = vmatpush1.msra.mxu0 0.0
        %492 = vmatprep.subr.mxu0 0.0
        %493 = vmatpush1.msra.mxu0 0.0
        %494 = vmatprep.subr.mxu0 0.0
        %495 = vmatpush1.msra.mxu0 0.0
        %496 = vmatprep.subr.mxu0 0.0
        %497 = vmatpush1.msra.mxu0 0.0
        %498 = vmatprep.subr.mxu0 0.0
        %499 = vmatpush1.msra.mxu0 0.0
        %500 = vmatprep.subr.mxu0 0.0
        %501 = vmatpush1.msra.mxu0 0.0
        %502 = vmatprep.subr.mxu0 0.0
        %503 = vmatpush1.msra.mxu0 0.0
        %504 = vmatprep.subr.mxu0 0.0
        %505 = vmatpush1.msra.mxu0 0.0
        %506 = vmatprep.subr.mxu0 0.0
        %507 = vmatpush1.msra.mxu0 0.0
        %508 = vmatprep.subr.mxu0 0.0
        %509 = vmatpush1.msra.mxu0 0.0
        %510 = vmatprep.subr.mxu0 0.0
        %511 = vmatpush1.msra.mxu0 0.0
        %512 = vmatprep.subr.mxu0 0.0
        %513 = vmatpush1.msra.mxu0 0.0
        %514 = vmatprep.subr.mxu0 0.0
        %515 = vmatpush1.msra.mxu0 0.0
        %516 = vmatprep.mubr.f32.mxu0 0.0
        %517 = vmatmul.mubr.f32.gmra.mrb[0].mxu0 %v379
        %v518 = vpop.f32.mrb[0].mxu0
        %v519 = vadd.f32 %v375, %v518
        %v520 = vpop.f32.mrb[0].mxu0
        %v521 = vadd.f32 %v375, %v520
        %522 = vdwg.mxu0
        %523 = vmatprep.subr.mxu0 %v201
        %524 = vmatpush1.msra.mxu0 %v200
        %525 = vmatprep.subr.mxu0 %v264
        %526 = vmatpush1.msra.mxu0 %v263
        %527 = vmatprep.subr.mxu0 %v324
        %528 = vmatpush1.msra.mxu0 %v323
        %529 = vmatprep.subr.mxu0 %v202
        %530 = vmatpush1.msra.mxu0 %v201
        %531 = vmatprep.subr.mxu0 %v265
        %532 = vmatpush1.msra.mxu0 %v264
        %533 = vmatprep.subr.mxu0 %v325
        %534 = vmatpush1.msra.mxu0 %v324
        %535 = vmatprep.subr.mxu0 %v203
        %536 = vmatpush1.msra.mxu0 %v202
        %537 = vmatprep.subr.mxu0 %v266
        %538 = vmatpush1.msra.mxu0 %v265
        %539 = vmatprep.subr.mxu0 %v326
        %540 = vmatpush1.msra.mxu0 %v325
        %541 = vmatprep.subr.mxu0 0.0
        %542 = vmatpush1.msra.mxu0 0.0
        %543 = vmatprep.subr.mxu0 0.0
        %544 = vmatpush1.msra.mxu0 0.0
        %545 = vmatprep.subr.mxu0 0.0
        %546 = vmatpush1.msra.mxu0 0.0
        %547 = vmatprep.subr.mxu0 0.0
        %548 = vmatpush1.msra.mxu0 0.0
        %549 = vmatprep.subr.mxu0 0.0
        %550 = vmatpush1.msra.mxu0 0.0
        %551 = vmatprep.subr.mxu0 0.0
        %552 = vmatpush1.msra.mxu0 0.0
        %553 = vmatprep.subr.mxu0 0.0
        %554 = vmatpush1.msra.mxu0 0.0
        %555 = vmatprep.subr.mxu0 0.0
        %556 = vmatpush1.msra.mxu0 0.0
        %557 = vmatprep.subr.mxu0 0.0
        %558 = vmatpush1.msra.mxu0 0.0
        %559 = vmatprep.subr.mxu0 0.0
        %560 = vmatpush1.msra.mxu0 0.0
        %561 = vmatprep.subr.mxu0 0.0
        %562 = vmatpush1.msra.mxu0 0.0
        %563 = vmatprep.subr.mxu0 0.0
        %564 = vmatpush1.msra.mxu0 0.0
        %565 = vmatprep.subr.mxu0 0.0
        %566 = vmatpush1.msra.mxu0 0.0
        %567 = vmatprep.subr.mxu0 0.0
        %568 = vmatpush1.msra.mxu0 0.0
        %569 = vmatprep.subr.mxu0 0.0
        %570 = vmatpush1.msra.mxu0 0.0
        %571 = vmatprep.subr.mxu0 0.0
        %572 = vmatpush1.msra.mxu0 0.0
        %573 = vmatprep.subr.mxu0 0.0
        %574 = vmatpush1.msra.mxu0 0.0
        %575 = vmatprep.subr.mxu0 0.0
        %576 = vmatpush1.msra.mxu0 0.0
        %577 = vmatprep.subr.mxu0 0.0
        %578 = vmatpush1.msra.mxu0 0.0
        %579 = vmatprep.subr.mxu0 0.0
        %580 = vmatpush1.msra.mxu0 0.0
        %581 = vmatprep.subr.mxu0 0.0
        %582 = vmatpush1.msra.mxu0 0.0
        %583 = vmatprep.subr.mxu0 0.0
        %584 = vmatpush1.msra.mxu0 0.0
        %585 = vmatprep.subr.mxu0 0.0
        %586 = vmatpush1.msra.mxu0 0.0
        %587 = vmatprep.mubr.f32.mxu0 0.0
        %588 = vmatmul.mubr.f32.gmra.mrb[0].mxu0 %v379
        %v589 = vpop.f32.mrb[0].mxu0
        %v590 = vadd.f32 %v375, %v589
        %v591 = vpop.f32.mrb[0].mxu0
        %v592 = vadd.f32 %v375, %v591
        %593 = vdwg.mxu0
        %594 = vmatprep.subr.mxu0 %v203
        %595 = vmatpush1.msra.mxu0 %v202
        %596 = vmatprep.subr.mxu0 %v266
        %597 = vmatpush1.msra.mxu0 %v265
        %598 = vmatprep.subr.mxu0 %v326
        %599 = vmatpush1.msra.mxu0 %v325
        %600 = vmatprep.subr.mxu0 %v204
        %601 = vmatpush1.msra.mxu0 %v203
        %602 = vmatprep.subr.mxu0 %v267
        %603 = vmatpush1.msra.mxu0 %v266
        %604 = vmatprep.subr.mxu0 %v327
        %605 = vmatpush1.msra.mxu0 %v326
        %606 = vmatprep.subr.mxu0 %v205
        %607 = vmatpush1.msra.mxu0 %v204
        %608 = vmatprep.subr.mxu0 %v268
        %609 = vmatpush1.msra.mxu0 %v267
        %610 = vmatprep.subr.mxu0 %v328
        %611 = vmatpush1.msra.mxu0 %v327
        %612 = vmatprep.subr.mxu0 0.0
        %613 = vmatpush1.msra.mxu0 0.0
        %614 = vmatprep.subr.mxu0 0.0
        %615 = vmatpush1.msra.mxu0 0.0
        %616 = vmatprep.subr.mxu0 0.0
        %617 = vmatpush1.msra.mxu0 0.0
        %618 = vmatprep.subr.mxu0 0.0
        %619 = vmatpush1.msra.mxu0 0.0
        %620 = vmatprep.subr.mxu0 0.0
        %621 = vmatpush1.msra.mxu0 0.0
        %622 = vmatprep.subr.mxu0 0.0
        %623 = vmatpush1.msra.mxu0 0.0
        %624 = vmatprep.subr.mxu0 0.0
        %625 = vmatpush1.msra.mxu0 0.0
        %626 = vmatprep.subr.mxu0 0.0
        %627 = vmatpush1.msra.mxu0 0.0
        %628 = vmatprep.subr.mxu0 0.0
        %629 = vmatpush1.msra.mxu0 0.0
        %630 = vmatprep.subr.mxu0 0.0
        %631 = vmatpush1.msra.mxu0 0.0
        %632 = vmatprep.subr.mxu0 0.0
        %633 = vmatpush1.msra.mxu0 0.0
        %634 = vmatprep.subr.mxu0 0.0
        %635 = vmatpush1.msra.mxu0 0.0
        %636 = vmatprep.subr.mxu0 0.0
        %637 = vmatpush1.msra.mxu0 0.0
        %638 = vmatprep.subr.mxu0 0.0
        %639 = vmatpush1.msra.mxu0 0.0
        %640 = vmatprep.subr.mxu0 0.0
        %641 = vmatpush1.msra.mxu0 0.0
        %642 = vmatprep.subr.mxu0 0.0
        %643 = vmatpush1.msra.mxu0 0.0
        %644 = vmatprep.subr.mxu0 0.0
        %645 = vmatpush1.msra.mxu0 0.0
        %646 = vmatprep.subr.mxu0 0.0
        %647 = vmatpush1.msra.mxu0 0.0
        %648 = vmatprep.subr.mxu0 0.0
        %649 = vmatpush1.msra.mxu0 0.0
        %650 = vmatprep.subr.mxu0 0.0
        %651 = vmatpush1.msra.mxu0 0.0
        %652 = vmatprep.subr.mxu0 0.0
        %653 = vmatpush1.msra.mxu0 0.0
        %654 = vmatprep.subr.mxu0 0.0
        %655 = vmatpush1.msra.mxu0 0.0
        %656 = vmatprep.subr.mxu0 0.0
        %657 = vmatpush1.msra.mxu0 0.0
        %658 = vmatprep.mubr.f32.mxu0 0.0
        %659 = vmatmul.mubr.f32.gmra.mrb[0].mxu0 %v379
        %v660 = vpop.f32.mrb[0].mxu0
        %v661 = vadd.f32 %v375, %v660
        %v662 = vpop.f32.mrb[0].mxu0
        %v663 = vadd.f32 %v375, %v662
        %664 = vdwg.mxu0
        %665 = vmatprep.subr.mxu0 %v205
        %666 = vmatpush1.msra.mxu0 %v204
        %667 = vmatprep.subr.mxu0 %v268
        %668 = vmatpush1.msra.mxu0 %v267
        %669 = vmatprep.subr.mxu0 %v328
        %670 = vmatpush1.msra.mxu0 %v327
        %671 = vmatprep.subr.mxu0 %v206
        %672 = vmatpush1.msra.mxu0 %v205
        %673 = vmatprep.subr.mxu0 %v269
        %674 = vmatpush1.msra.mxu0 %v268
        %675 = vmatprep.subr.mxu0 %v329
        %676 = vmatpush1.msra.mxu0 %v328
        %677 = vmatprep.subr.mxu0 %v207
        %678 = vmatpush1.msra.mxu0 %v206
        %679 = vmatprep.subr.mxu0 %v270
        %680 = vmatpush1.msra.mxu0 %v269
        %681 = vmatprep.subr.mxu0 %v330
        %682 = vmatpush1.msra.mxu0 %v329
        %683 = vmatprep.subr.mxu0 0.0
        %684 = vmatpush1.msra.mxu0 0.0
        %685 = vmatprep.subr.mxu0 0.0
        %686 = vmatpush1.msra.mxu0 0.0
        %687 = vmatprep.subr.mxu0 0.0
        %688 = vmatpush1.msra.mxu0 0.0
        %689 = vmatprep.subr.mxu0 0.0
        %690 = vmatpush1.msra.mxu0 0.0
        %691 = vmatprep.subr.mxu0 0.0
        %692 = vmatpush1.msra.mxu0 0.0
        %693 = vmatprep.subr.mxu0 0.0
        %694 = vmatpush1.msra.mxu0 0.0
        %695 = vmatprep.subr.mxu0 0.0
        %696 = vmatpush1.msra.mxu0 0.0
        %697 = vmatprep.subr.mxu0 0.0
        %698 = vmatpush1.msra.mxu0 0.0
        %699 = vmatprep.subr.mxu0 0.0
        %700 = vmatpush1.msra.mxu0 0.0
        %701 = vmatprep.subr.mxu0 0.0
        %702 = vmatpush1.msra.mxu0 0.0
        %703 = vmatprep.subr.mxu0 0.0
        %704 = vmatpush1.msra.mxu0 0.0
        %705 = vmatprep.subr.mxu0 0.0
        %706 = vmatpush1.msra.mxu0 0.0
        %707 = vmatprep.subr.mxu0 0.0
        %708 = vmatpush1.msra.mxu0 0.0
        %709 = vmatprep.subr.mxu0 0.0
        %710 = vmatpush1.msra.mxu0 0.0
        %711 = vmatprep.subr.mxu0 0.0
        %712 = vmatpush1.msra.mxu0 0.0
        %713 = vmatprep.subr.mxu0 0.0
        %714 = vmatpush1.msra.mxu0 0.0
        %715 = vmatprep.subr.mxu0 0.0
        %716 = vmatpush1.msra.mxu0 0.0
        %717 = vmatprep.subr.mxu0 0.0
        %718 = vmatpush1.msra.mxu0 0.0
        %719 = vmatprep.subr.mxu0 0.0
        %720 = vmatpush1.msra.mxu0 0.0
        %721 = vmatprep.subr.mxu0 0.0
        %722 = vmatpush1.msra.mxu0 0.0
        %723 = vmatprep.subr.mxu0 0.0
        %724 = vmatpush1.msra.mxu0 0.0
        %725 = vmatprep.subr.mxu0 0.0
        %726 = vmatpush1.msra.mxu0 0.0
        %727 = vmatprep.subr.mxu0 0.0
        %728 = vmatpush1.msra.mxu0 0.0
        %729 = vmatprep.mubr.f32.mxu0 0.0
        %730 = vmatmul.mubr.f32.gmra.mrb[0].mxu0 %v379
        %v731 = vpop.f32.mrb[0].mxu0
        %v732 = vadd.f32 %v375, %v731
        %v733 = vpop.f32.mrb[0].mxu0
        %v734 = vadd.f32 %v375, %v733
        %735 = vdwg.mxu0
        %736 = vmatprep.subr.mxu0 %v207
        %737 = vmatpush1.msra.mxu0 %v206
        %738 = vmatprep.subr.mxu0 %v270
        %739 = vmatpush1.msra.mxu0 %v269
        %740 = vmatprep.subr.mxu0 %v330
        %741 = vmatpush1.msra.mxu0 %v329
        %742 = vmatprep.subr.mxu0 %v208
        %743 = vmatpush1.msra.mxu0 %v207
        %744 = vmatprep.subr.mxu0 %v271
        %745 = vmatpush1.msra.mxu0 %v270
        %746 = vmatprep.subr.mxu0 %v331
        %747 = vmatpush1.msra.mxu0 %v330
        %748 = vmatprep.subr.mxu0 %v209
        %749 = vmatpush1.msra.mxu0 %v208
        %750 = vmatprep.subr.mxu0 %v272
        %751 = vmatpush1.msra.mxu0 %v271
        %752 = vmatprep.subr.mxu0 %v332
        %753 = vmatpush1.msra.mxu0 %v331
        %754 = vmatprep.subr.mxu0 0.0
        %755 = vmatpush1.msra.mxu0 0.0
        %756 = vmatprep.subr.mxu0 0.0
        %757 = vmatpush1.msra.mxu0 0.0
        %758 = vmatprep.subr.mxu0 0.0
        %759 = vmatpush1.msra.mxu0 0.0
        %760 = vmatprep.subr.mxu0 0.0
        %761 = vmatpush1.msra.mxu0 0.0
        %762 = vmatprep.subr.mxu0 0.0
        %763 = vmatpush1.msra.mxu0 0.0
        %764 = vmatprep.subr.mxu0 0.0
        %765 = vmatpush1.msra.mxu0 0.0
        %766 = vmatprep.subr.mxu0 0.0
        %767 = vmatpush1.msra.mxu0 0.0
        %768 = vmatprep.subr.mxu0 0.0
        %769 = vmatpush1.msra.mxu0 0.0
        %770 = vmatprep.subr.mxu0 0.0
        %771 = vmatpush1.msra.mxu0 0.0
        %772 = vmatprep.subr.mxu0 0.0
        %773 = vmatpush1.msra.mxu0 0.0
        %774 = vmatprep.subr.mxu0 0.0
        %775 = vmatpush1.msra.mxu0 0.0
        %776 = vmatprep.subr.mxu0 0.0
        %777 = vmatpush1.msra.mxu0 0.0
        %778 = vmatprep.subr.mxu0 0.0
        %779 = vmatpush1.msra.mxu0 0.0
        %780 = vmatprep.subr.mxu0 0.0
        %781 = vmatpush1.msra.mxu0 0.0
        %782 = vmatprep.subr.mxu0 0.0
        %783 = vmatpush1.msra.mxu0 0.0
        %784 = vmatprep.subr.mxu0 0.0
        %785 = vmatpush1.msra.mxu0 0.0
        %786 = vmatprep.subr.mxu0 0.0
        %787 = vmatpush1.msra.mxu0 0.0
        %788 = vmatprep.subr.mxu0 0.0
        %789 = vmatpush1.msra.mxu0 0.0
        %790 = vmatprep.subr.mxu0 0.0
        %791 = vmatpush1.msra.mxu0 0.0
        %792 = vmatprep.subr.mxu0 0.0
        %793 = vmatpush1.msra.mxu0 0.0
        %794 = vmatprep.subr.mxu0 0.0
        %795 = vmatpush1.msra.mxu0 0.0
        %796 = vmatprep.subr.mxu0 0.0
        %797 = vmatpush1.msra.mxu0 0.0
        %798 = vmatprep.subr.mxu0 0.0
        %799 = vmatpush1.msra.mxu0 0.0
        %800 = vmatprep.mubr.f32.mxu0 0.0
        %801 = vmatmul.mubr.f32.gmra.mrb[0].mxu0 %v379
        %v802 = vpop.f32.mrb[0].mxu0
        %v803 = vadd.f32 %v375, %v802
        %v804 = vpop.f32.mrb[0].mxu0
        %v805 = vadd.f32 %v375, %v804
        %806 = vdwg.mxu0
        %807 = vmatprep.subr.mxu0 %v209
        %808 = vmatpush1.msra.mxu0 %v208
        %809 = vmatprep.subr.mxu0 %v272
        %810 = vmatpush1.msra.mxu0 %v271
        %811 = vmatprep.subr.mxu0 %v332
        %812 = vmatpush1.msra.mxu0 %v331
        %813 = vmatprep.subr.mxu0 %v210
        %814 = vmatpush1.msra.mxu0 %v209
        %815 = vmatprep.subr.mxu0 %v351
        %816 = vmatpush1.msra.mxu0 %v272
        %817 = vmatprep.subr.mxu0 %v356
        %818 = vmatpush1.msra.mxu0 %v332
        %819 = vmatprep.subr.mxu0 %v211
        %820 = vmatpush1.msra.mxu0 %v210
        %821 = vmatprep.subr.mxu0 %v362
        %822 = vmatpush1.msra.mxu0 %v351
        %823 = vmatprep.subr.mxu0 %v367
        %824 = vmatpush1.msra.mxu0 %v356
        %825 = vmatprep.subr.mxu0 0.0
        %826 = vmatpush1.msra.mxu0 0.0
        %827 = vmatprep.subr.mxu0 0.0
        %828 = vmatpush1.msra.mxu0 0.0
        %829 = vmatprep.subr.mxu0 0.0
        %830 = vmatpush1.msra.mxu0 0.0
        %831 = vmatprep.subr.mxu0 0.0
        %832 = vmatpush1.msra.mxu0 0.0
        %833 = vmatprep.subr.mxu0 0.0
        %834 = vmatpush1.msra.mxu0 0.0
        %835 = vmatprep.subr.mxu0 0.0
        %836 = vmatpush1.msra.mxu0 0.0
        %837 = vmatprep.subr.mxu0 0.0
        %838 = vmatpush1.msra.mxu0 0.0
        %839 = vmatprep.subr.mxu0 0.0
        %840 = vmatpush1.msra.mxu0 0.0
        %841 = vmatprep.subr.mxu0 0.0
        %842 = vmatpush1.msra.mxu0 0.0
        %843 = vmatprep.subr.mxu0 0.0
        %844 = vmatpush1.msra.mxu0 0.0
        %845 = vmatprep.subr.mxu0 0.0
        %846 = vmatpush1.msra.mxu0 0.0
        %847 = vmatprep.subr.mxu0 0.0
        %848 = vmatpush1.msra.mxu0 0.0
        %849 = vmatprep.subr.mxu0 0.0
        %850 = vmatpush1.msra.mxu0 0.0
        %851 = vmatprep.subr.mxu0 0.0
        %852 = vmatpush1.msra.mxu0 0.0
        %853 = vmatprep.subr.mxu0 0.0
        %854 = vmatpush1.msra.mxu0 0.0
        %855 = vmatprep.subr.mxu0 0.0
        %856 = vmatpush1.msra.mxu0 0.0
        %857 = vmatprep.subr.mxu0 0.0
        %858 = vmatpush1.msra.mxu0 0.0
        %859 = vmatprep.subr.mxu0 0.0
        %860 = vmatpush1.msra.mxu0 0.0
        %861 = vmatprep.subr.mxu0 0.0
        %862 = vmatpush1.msra.mxu0 0.0
        %863 = vmatprep.subr.mxu0 0.0
        %864 = vmatpush1.msra.mxu0 0.0
        %865 = vmatprep.subr.mxu0 0.0
        %866 = vmatpush1.msra.mxu0 0.0
        %867 = vmatprep.subr.mxu0 0.0
        %868 = vmatpush1.msra.mxu0 0.0
        %869 = vmatprep.subr.mxu0 0.0
        %870 = vmatpush1.msra.mxu0 0.0
        %871 = vmatprep.mubr.f32.mxu0 0.0
        %872 = vmatmul.mubr.f32.gmra.mrb[0].mxu0 %v379
        %v873 = vpop.f32.mrb[0].mxu0
        %v874 = vadd.f32 %v375, %v873
        %v875 = vpop.f32.mrb[0].mxu0
        %v876 = vadd.f32 %v375, %v875
        %877 = vdwg.mxu0
        %878 = vmatprep.subr.mxu0 0.0
        %879 = vmatpush1.msra.mxu0 %v210
        %880 = vmatprep.subr.mxu0 0.0
        %881 = vmatpush1.msra.mxu0 %v257
        %882 = vmatprep.subr.mxu0 0.0
        %883 = vmatpush1.msra.mxu0 %v317
        %884 = vmatprep.subr.mxu0 0.0
        %885 = vmatpush1.msra.mxu0 %v211
        %886 = vmatprep.subr.mxu0 0.0
        %887 = vmatpush1.msra.mxu0 %v350
        %888 = vmatprep.subr.mxu0 0.0
        %889 = vmatpush1.msra.mxu0 %v355
        %890 = vmatprep.subr.mxu0 0.0
        %891 = vmatpush1.msra.mxu0 %v212
        %892 = vmatprep.subr.mxu0 0.0
        %893 = vmatpush1.msra.mxu0 %v361
        %894 = vmatprep.subr.mxu0 0.0
        %895 = vmatpush1.msra.mxu0 %v366
        %896 = vmatprep.subr.mxu0 0.0
        %897 = vmatpush1.msra.mxu0 0.0
        %898 = vmatprep.subr.mxu0 0.0
        %899 = vmatpush1.msra.mxu0 0.0
        %900 = vmatprep.subr.mxu0 0.0
        %901 = vmatpush1.msra.mxu0 0.0
        %902 = vmatprep.subr.mxu0 0.0
        %903 = vmatpush1.msra.mxu0 0.0
        %904 = vmatprep.subr.mxu0 0.0
        %905 = vmatpush1.msra.mxu0 0.0
        %906 = vmatprep.subr.mxu0 0.0
        %907 = vmatpush1.msra.mxu0 0.0
        %908 = vmatprep.subr.mxu0 0.0
        %909 = vmatpush1.msra.mxu0 0.0
        %910 = vmatprep.subr.mxu0 0.0
        %911 = vmatpush1.msra.mxu0 0.0
        %912 = vmatprep.subr.mxu0 0.0
        %913 = vmatpush1.msra.mxu0 0.0
        %914 = vmatprep.subr.mxu0 0.0
        %915 = vmatpush1.msra.mxu0 0.0
        %916 = vmatprep.subr.mxu0 0.0
        %917 = vmatpush1.msra.mxu0 0.0
        %918 = vmatprep.subr.mxu0 0.0
        %919 = vmatpush1.msra.mxu0 0.0
        %920 = vmatprep.subr.mxu0 0.0
        %921 = vmatpush1.msra.mxu0 0.0
        %922 = vmatprep.subr.mxu0 0.0
        %923 = vmatpush1.msra.mxu0 0.0
        %924 = vmatprep.subr.mxu0 0.0
        %925 = vmatpush1.msra.mxu0 0.0
        %926 = vmatprep.subr.mxu0 0.0
        %927 = vmatpush1.msra.mxu0 0.0
        %928 = vmatprep.subr.mxu0 0.0
        %929 = vmatpush1.msra.mxu0 0.0
        %930 = vmatprep.subr.mxu0 0.0
        %931 = vmatpush1.msra.mxu0 0.0
        %932 = vmatprep.subr.mxu0 0.0
        %933 = vmatpush1.msra.mxu0 0.0
        %934 = vmatprep.subr.mxu0 0.0
        %935 = vmatpush1.msra.mxu0 0.0
        %936 = vmatprep.subr.mxu0 0.0
        %937 = vmatpush1.msra.mxu0 0.0
        %938 = vmatprep.subr.mxu0 0.0
        %939 = vmatpush1.msra.mxu0 0.0
        %940 = vmatprep.subr.mxu0 0.0
        %941 = vmatpush1.msra.mxu0 0.0
        %942 = vmatprep.mubr.f32.mxu0 0.0
        %943 = vmatmul.mubr.f32.gmra.mrb[0].mxu0 %v379
        %v944 = vpop.f32.mrb[0].mxu0
        %v945 = vadd.f32 %v375, %v944
        %v946 = vpop.f32.mrb[0].mxu0
        %947 = vdwg.mxu0
        %v948 = vmax.f32 %v448, 0.0
        %v949 = vmax.f32 %v450, 0.0
        %v950 = vmax.f32 %v519, 0.0
        %v951 = vmax.f32 %v521, 0.0
        %v952 = vmax.f32 %v590, 0.0
        %v953 = vmax.f32 %v592, 0.0
        %v954 = vmax.f32 %v661, 0.0
        %v955 = vmax.f32 %v663, 0.0
        %v956 = vmax.f32 %v732, 0.0
        %v957 = vmax.f32 %v734, 0.0
        %v958 = vmax.f32 %v803, 0.0
        %v959 = vmax.f32 %v805, 0.0
        %v960 = vmax.f32 %v874, 0.0
        %v961 = vmax.f32 %v876, 0.0
        %v962 = vmax.f32 %v945, 0.0
        %v963 = vmax.f32 %v948, %v949
        %v964 = vmax.f32 %v949, %v950
        %v965 = vmax.f32 %v950, %v951
        %v966 = vmax.f32 %v951, %v952
        %v967 = vmax.f32 %v952, %v953
        %v968 = vmax.f32 %v953, %v954
        %v969 = vmax.f32 %v954, %v955
        %v970 = vmax.f32 %v955, %v956
        %v971 = vmax.f32 %v956, %v957
        %v972 = vmax.f32 %v957, %v958
        %v973 = vmax.f32 %v958, %v959
        %v974 = vmax.f32 %v959, %v960
        %v975 = vmax.f32 %v960, %v961
        %v976 = vmax.f32 %v961, %v962
        %991 = vrot.lane.b32.xlu0 %v963, 127
        %v992 = vpop.permute.xlu0 %991
        %993 = vrot.lane.b32.xlu0 %v964, 127
        %v994 = vpop.permute.xlu0 %993
        %995 = vrot.lane.b32.xlu0 %v965, 127
        %v996 = vpop.permute.xlu0 %995
        %997 = vrot.lane.b32.xlu0 %v966, 127
        %v998 = vpop.permute.xlu0 %997
        %999 = vrot.lane.b32.xlu0 %v967, 127
        %v1000 = vpop.permute.xlu0 %999
        %1001 = vrot.lane.b32.xlu0 %v968, 127
        %v1002 = vpop.permute.xlu0 %1001
        %1003 = vrot.lane.b32.xlu0 %v969, 127
        %v1004 = vpop.permute.xlu0 %1003
        %1005 = vrot.lane.b32.xlu0 %v970, 127
        %v1006 = vpop.permute.xlu0 %1005
        %1007 = vrot.lane.b32.xlu0 %v971, 127
        %v1008 = vpop.permute.xlu0 %1007
        %1009 = vrot.lane.b32.xlu0 %v972, 127
        %v1010 = vpop.permute.xlu0 %1009
        %1011 = vrot.lane.b32.xlu0 %v973, 127
        %v1012 = vpop.permute.xlu0 %1011
        %1013 = vrot.lane.b32.xlu0 %v974, 127
        %v1014 = vpop.permute.xlu0 %1013
        %1015 = vrot.lane.b32.xlu0 %v975, 127
        %v1016 = vpop.permute.xlu0 %1015
        %1017 = vrot.lane.b32.xlu0 %v976, 127
        %v1018 = vpop.permute.xlu0 %1017
        %v1019 = vsel %vm258, %v992, %v994
        %v1020 = vsel %vm258, %v996, %v998
        %v1021 = vsel %vm258, %v1000, %v1002
        %v1022 = vsel %vm258, %v1004, %v1006
        %v1023 = vsel %vm258, %v1008, %v1010
        %v1024 = vsel %vm258, %v1012, %v1014
        %v1025 = vsel %vm258, %v1016, %v1018
        %v1033 = vmax.f32 %v963, %v1019
        %v1034 = vmax.f32 %v965, %v1020
        %v1035 = vmax.f32 %v967, %v1021
        %v1036 = vmax.f32 %v969, %v1022
        %v1037 = vmax.f32 %v971, %v1023
        %v1038 = vmax.f32 %v973, %v1024
        %v1039 = vmax.f32 %v975, %v1025
        %v1040 = vld [vmem:[%s3] sm:$0xff]
        %v1041 = vld [vmem:[%s3 + $0x8] sm:$0xff]
        %v1042 = vld [vmem:[%s3 + $0x10] sm:$0xff]
        %v1043 = vld [vmem:[%s3 + $0x18] sm:$0xff]
        %v1044 = vld [vmem:[%s3 + $0x20] sm:$0xff]
        %v1045 = vld [vmem:[%s3 + $0x28] sm:$0xff]
        %v1046 = vld [vmem:[%s3 + $0x30] sm:$0xff]
        %v1047 = vld [vmem:[%s3 + $0x38] sm:$0xff]
        %v1048 = vld [vmem:[%s3 + $0x40] sm:$0xff]
        %v1049 = vld [vmem:[%s3 + $0x48] sm:$0xff]
        %v1050 = vld [vmem:[%s3 + $0x50] sm:$0xff]
        %v1051 = vld [vmem:[%s3 + $0x58] sm:$0xff]
        %v1052 = vld [vmem:[%s3 + $0x60] sm:$0xff]
        %v1053 = vld [vmem:[%s3 + $0x68] sm:$0xff]
        %v1054 = vld [vmem:[%s3 + $0x70] sm:$0xff]
        %v1055 = vld [vmem:[%s3 + $0x78] sm:$0xff]
        %v1056 = vld [vmem:[%s3 + $0x80] sm:$0xff]
        %v1057 = vld [vmem:[%s3 + $0x88] sm:$0xff]
        %v1058 = vld [vmem:[%s3 + $0x90] sm:$0xff]
        %v1059 = vld [vmem:[%s3 + $0x98] sm:$0xff]
        %v1060 = vld [vmem:[%s3 + $0xa0] sm:$0xff]
        %v1061 = vld [vmem:[%s3 + $0xa8] sm:$0xff]
        %v1062 = vld [vmem:[%s3 + $0xb0] sm:$0xff]
        %v1063 = vld [vmem:[%s3 + $0xb8] sm:$0xff]
        %v1064 = vld [vmem:[%s3 + $0xc0] sm:$0xff]
        %v1065 = vld [vmem:[%s3 + $0xc8] sm:$0xff]
        %v1066 = vld [vmem:[%s3 + $0xd0] sm:$0xff]
        %v1067 = vld [vmem:[%s3 + $0xd8] sm:$0xff]
        %v1068 = vld [vmem:[%s3 + $0xe0] sm:$0xff]
        %v1069 = vld [vmem:[%s3 + $0xe8] sm:$0xff]
        %v1070 = vld [vmem:[%s3 + $0xf0] sm:$0xff]
        %v1071 = vld [vmem:[%s3 + $0xf8] sm:$0xff]
        %v1072 = vld [vmem:[%s3 + $0x100] sm:$0xff]
        %v1073 = vld [vmem:[%s3 + $0x108] sm:$0xff]
        %v1074 = vld [vmem:[%s3 + $0x110] sm:$0xff]
        %v1075 = vld [vmem:[%s3 + $0x118] sm:$0xff]
        %v1076 = vld [vmem:[%s3 + $0x120] sm:$0xff]
        %v1077 = vld [vmem:[%s3 + $0x128] sm:$0xff]
        %v1078 = vld [vmem:[%s3 + $0x130] sm:$0xff]
        %v1079 = vld [vmem:[%s3 + $0x138] sm:$0xff]
        %v1080 = vld [vmem:[%s3 + $0x140] sm:$0xff]
        %v1081 = vld [vmem:[%s3 + $0x148] sm:$0xff]
        %v1082 = vld [vmem:[%s3 + $0x150] sm:$0xff]
        %v1083 = vld [vmem:[%s3 + $0x158] sm:$0xff]
        %v1084 = vld [vmem:[%s3 + $0x160] sm:$0xff]
        %v1085 = vld [vmem:[%s3 + $0x168] sm:$0xff]
        %v1086 = vld [vmem:[%s3 + $0x170] sm:$0xff]
        %v1087 = vld [vmem:[%s3 + $0x178] sm:$0xff]
        %v1088 = vld [vmem:[%s3 + $0x180] sm:$0xff]
        %v1089 = vld [vmem:[%s3 + $0x188] sm:$0xff]
        %v1090 = vld [vmem:[%s3 + $0x190] sm:$0xff]
        %v1091 = vld [vmem:[%s3 + $0x198] sm:$0xff]
        %v1092 = vld [vmem:[%s3 + $0x1a0] sm:$0xff]
        %v1093 = vld [vmem:[%s3 + $0x1a8] sm:$0xff]
        %v1094 = vld [vmem:[%s3 + $0x1b0] sm:$0xff]
        %v1095 = vld [vmem:[%s3 + $0x1b8] sm:$0xff]
        %v1096 = vld [vmem:[%s3 + $0x1c0] sm:$0xff]
        %v1097 = vld [vmem:[%s3 + $0x1c8] sm:$0xff]
        %v1098 = vld [vmem:[%s3 + $0x1d0] sm:$0xff]
        %v1099 = vld [vmem:[%s3 + $0x1d8] sm:$0xff]
        %v1100 = vld [vmem:[%s3 + $0x1e0] sm:$0xff]
        %v1101 = vld [vmem:[%s3 + $0x1e8] sm:$0xff]
        %v1102 = vld [vmem:[%s3 + $0x1f0] sm:$0xff]
        %v1103 = vld [vmem:[%s3 + $0x1f8] sm:$0xff]
        %v1104 = vld [vmem:[%s3 + $0x200] sm:$0xff]
        %v1105 = vld [vmem:[%s3 + $0x208] sm:$0xff]
        %v1106 = vld [vmem:[%s3 + $0x210] sm:$0xff]
        %v1107 = vld [vmem:[%s3 + $0x218] sm:$0xff]
        %v1108 = vld [vmem:[%s3 + $0x220] sm:$0xff]
        %v1109 = vld [vmem:[%s3 + $0x228] sm:$0xff]
        %v1110 = vld [vmem:[%s3 + $0x230] sm:$0xff]
        %v1111 = vld [vmem:[%s3 + $0x238] sm:$0xff]
        %v1112 = vld [vmem:[%s3 + $0x240] sm:$0xff]
        %v1113 = vld [vmem:[%s3 + $0x248] sm:$0xff]
        %v1114 = vld [vmem:[%s3 + $0x250] sm:$0xff]
        %v1115 = vld [vmem:[%s3 + $0x258] sm:$0xff]
        %v1116 = vld [vmem:[%s3 + $0x260] sm:$0xff]
        %v1117 = vld [vmem:[%s3 + $0x268] sm:$0xff]
        %v1118 = vld [vmem:[%s3 + $0x270] sm:$0xff]
        %v1119 = vld [vmem:[%s3 + $0x278] sm:$0xff]
        %v1120 = vld [vmem:[%s3 + $0x280] sm:$0xff]
        %v1121 = vld [vmem:[%s3 + $0x288] sm:$0xff]
        %v1122 = vld [vmem:[%s3 + $0x290] sm:$0xff]
        %v1123 = vld [vmem:[%s3 + $0x298] sm:$0xff]
        %v1124 = vld [vmem:[%s3 + $0x2a0] sm:$0xff]
        %v1125 = vld [vmem:[%s3 + $0x2a8] sm:$0xff]
        %v1126 = vld [vmem:[%s3 + $0x2b0] sm:$0xff]
        %v1127 = vld [vmem:[%s3 + $0x2b8] sm:$0xff]
        %v1128 = vld [vmem:[%s3 + $0x2c0] sm:$0xff]
        %v1129 = vld [vmem:[%s3 + $0x2c8] sm:$0xff]
        %v1130 = vld [vmem:[%s3 + $0x2d0] sm:$0xff]
        %v1131 = vld [vmem:[%s3 + $0x2d8] sm:$0xff]
        %v1132 = vld [vmem:[%s3 + $0x2e0] sm:$0xff]
        %v1133 = vld [vmem:[%s3 + $0x2e8] sm:$0xff]
        %v1134 = vld [vmem:[%s3 + $0x2f0] sm:$0xff]
        %v1135 = vld [vmem:[%s3 + $0x2f8] sm:$0xff]
        %v1136 = vld [vmem:[%s3 + $0x300] sm:$0xff]
        %v1137 = vld [vmem:[%s3 + $0x308] sm:$0xff]
        %v1138 = vld [vmem:[%s3 + $0x310] sm:$0xff]
        %v1139 = vld [vmem:[%s3 + $0x318] sm:$0xff]
        %v1140 = vld [vmem:[%s3 + $0x320] sm:$0xff]
        %v1141 = vld [vmem:[%s3 + $0x328] sm:$0xff]
        %v1142 = vld [vmem:[%s3 + $0x330] sm:$0xff]
        %v1143 = vld [vmem:[%s3 + $0x338] sm:$0xff]
        %v1144 = vld [vmem:[%s3 + $0x340] sm:$0xff]
        %v1145 = vld [vmem:[%s3 + $0x348] sm:$0xff]
        %v1146 = vld [vmem:[%s3 + $0x350] sm:$0xff]
        %v1147 = vld [vmem:[%s3 + $0x358] sm:$0xff]
        %v1148 = vld [vmem:[%s3 + $0x360] sm:$0xff]
        %v1149 = vld [vmem:[%s3 + $0x368] sm:$0xff]
        %v1150 = vld [vmem:[%s3 + $0x370] sm:$0xff]
        %v1151 = vld [vmem:[%s3 + $0x378] sm:$0xff]
        %1152 = vmatprep.subr.mxu0 0.0
        %1153 = vmatpush1.msra.mxu0 %v1040
        %1154 = vmatprep.subr.mxu0 0.0
        %1155 = vmatpush1.msra.mxu0 %v1041
        %1156 = vmatprep.subr.mxu0 0.0
        %1157 = vmatpush1.msra.mxu0 %v1042
        %1158 = vmatprep.subr.mxu0 0.0
        %1159 = vmatpush1.msra.mxu0 %v1043
        %1160 = vmatprep.subr.mxu0 0.0
        %1161 = vmatpush1.msra.mxu0 %v1044
        %1162 = vmatprep.subr.mxu0 0.0
        %1163 = vmatpush1.msra.mxu0 %v1045
        %1164 = vmatprep.subr.mxu0 0.0
        %1165 = vmatpush1.msra.mxu0 %v1046
        %1166 = vmatprep.subr.mxu0 0.0
        %1167 = vmatpush1.msra.mxu0 %v1047
        %1168 = vmatprep.subr.mxu0 0.0
        %1169 = vmatpush1.msra.mxu0 %v1048
        %1170 = vmatprep.subr.mxu0 0.0
        %1171 = vmatpush1.msra.mxu0 %v1049
        %1172 = vmatprep.subr.mxu0 0.0
        %1173 = vmatpush1.msra.mxu0 %v1050
        %1174 = vmatprep.subr.mxu0 0.0
        %1175 = vmatpush1.msra.mxu0 %v1051
        %1176 = vmatprep.subr.mxu0 0.0
        %1177 = vmatpush1.msra.mxu0 %v1052
        %1178 = vmatprep.subr.mxu0 0.0
        %1179 = vmatpush1.msra.mxu0 %v1053
        %1180 = vmatprep.subr.mxu0 0.0
        %1181 = vmatpush1.msra.mxu0 %v1054
        %1182 = vmatprep.subr.mxu0 0.0
        %1183 = vmatpush1.msra.mxu0 %v1055
        %1184 = vmatprep.subr.mxu0 0.0
        %1185 = vmatpush1.msra.mxu0 %v1056
        %1186 = vmatprep.subr.mxu0 0.0
        %1187 = vmatpush1.msra.mxu0 %v1057
        %1188 = vmatprep.subr.mxu0 0.0
        %1189 = vmatpush1.msra.mxu0 %v1058
        %1190 = vmatprep.subr.mxu0 0.0
        %1191 = vmatpush1.msra.mxu0 %v1059
        %1192 = vmatprep.subr.mxu0 0.0
        %1193 = vmatpush1.msra.mxu0 %v1060
        %1194 = vmatprep.subr.mxu0 0.0
        %1195 = vmatpush1.msra.mxu0 %v1061
        %1196 = vmatprep.subr.mxu0 0.0
        %1197 = vmatpush1.msra.mxu0 %v1062
        %1198 = vmatprep.subr.mxu0 0.0
        %1199 = vmatpush1.msra.mxu0 %v1063
        %1200 = vmatprep.subr.mxu0 0.0
        %1201 = vmatpush1.msra.mxu0 %v1064
        %1202 = vmatprep.subr.mxu0 0.0
        %1203 = vmatpush1.msra.mxu0 %v1065
        %1204 = vmatprep.subr.mxu0 0.0
        %1205 = vmatpush1.msra.mxu0 %v1066
        %1206 = vmatprep.subr.mxu0 0.0
        %1207 = vmatpush1.msra.mxu0 %v1067
        %1208 = vmatprep.subr.mxu0 0.0
        %1209 = vmatpush1.msra.mxu0 %v1068
        %1210 = vmatprep.subr.mxu0 0.0
        %1211 = vmatpush1.msra.mxu0 %v1069
        %1212 = vmatprep.subr.mxu0 0.0
        %1213 = vmatpush1.msra.mxu0 %v1070
        %1214 = vmatprep.subr.mxu0 0.0
        %1215 = vmatpush1.msra.mxu0 %v1071
        %1216 = vmatprep.mubr.f32.mxu0 %v1034
        %1217 = vmatmul.mubr.f32.gmra.mrb[0].mxu0 %v1033
        %v1218 = vpop.f32.mrb[0].mxu0
        %v1219 = vadd.f32 0.0, %v1218
        %v1220 = vpop.f32.mrb[0].mxu0
        %1221 = vdwg.mxu0
        %1222 = vmatprep.subr.mxu0 0.0
        %1223 = vmatpush1.msra.mxu0 %v1072
        %1224 = vmatprep.subr.mxu0 0.0
        %1225 = vmatpush1.msra.mxu0 %v1073
        %1226 = vmatprep.subr.mxu0 0.0
        %1227 = vmatpush1.msra.mxu0 %v1074
        %1228 = vmatprep.subr.mxu0 0.0
        %1229 = vmatpush1.msra.mxu0 %v1075
        %1230 = vmatprep.subr.mxu0 0.0
        %1231 = vmatpush1.msra.mxu0 %v1076
        %1232 = vmatprep.subr.mxu0 0.0
        %1233 = vmatpush1.msra.mxu0 %v1077
        %1234 = vmatprep.subr.mxu0 0.0
        %1235 = vmatpush1.msra.mxu0 %v1078
        %1236 = vmatprep.subr.mxu0 0.0
        %1237 = vmatpush1.msra.mxu0 %v1079
        %1238 = vmatprep.subr.mxu0 0.0
        %1239 = vmatpush1.msra.mxu0 %v1080
        %1240 = vmatprep.subr.mxu0 0.0
        %1241 = vmatpush1.msra.mxu0 %v1081
        %1242 = vmatprep.subr.mxu0 0.0
        %1243 = vmatpush1.msra.mxu0 %v1082
        %1244 = vmatprep.subr.mxu0 0.0
        %1245 = vmatpush1.msra.mxu0 %v1083
        %1246 = vmatprep.subr.mxu0 0.0
        %1247 = vmatpush1.msra.mxu0 %v1084
        %1248 = vmatprep.subr.mxu0 0.0
        %1249 = vmatpush1.msra.mxu0 %v1085
        %1250 = vmatprep.subr.mxu0 0.0
        %1251 = vmatpush1.msra.mxu0 %v1086
        %1252 = vmatprep.subr.mxu0 0.0
        %1253 = vmatpush1.msra.mxu0 %v1087
        %1254 = vmatprep.subr.mxu0 0.0
        %1255 = vmatpush1.msra.mxu0 %v1088
        %1256 = vmatprep.subr.mxu0 0.0
        %1257 = vmatpush1.msra.mxu0 %v1089
        %1258 = vmatprep.subr.mxu0 0.0
        %1259 = vmatpush1.msra.mxu0 %v1090
        %1260 = vmatprep.subr.mxu0 0.0
        %1261 = vmatpush1.msra.mxu0 %v1091
        %1262 = vmatprep.subr.mxu0 0.0
        %1263 = vmatpush1.msra.mxu0 %v1092
        %1264 = vmatprep.subr.mxu0 0.0
        %1265 = vmatpush1.msra.mxu0 %v1093
        %1266 = vmatprep.subr.mxu0 0.0
        %1267 = vmatpush1.msra.mxu0 %v1094
        %1268 = vmatprep.subr.mxu0 0.0
        %1269 = vmatpush1.msra.mxu0 %v1095
        %1270 = vmatprep.subr.mxu0 0.0
        %1271 = vmatpush1.msra.mxu0 %v1096
        %1272 = vmatprep.subr.mxu0 0.0
        %1273 = vmatpush1.msra.mxu0 %v1097
        %1274 = vmatprep.subr.mxu0 0.0
        %1275 = vmatpush1.msra.mxu0 %v1098
        %1276 = vmatprep.subr.mxu0 0.0
        %1277 = vmatpush1.msra.mxu0 %v1099
        %1278 = vmatprep.subr.mxu0 0.0
        %1279 = vmatpush1.msra.mxu0 %v1100
        %1280 = vmatprep.subr.mxu0 0.0
        %1281 = vmatpush1.msra.mxu0 %v1101
        %1282 = vmatprep.subr.mxu0 0.0
        %1283 = vmatpush1.msra.mxu0 %v1102
        %1284 = vmatprep.subr.mxu0 0.0
        %1285 = vmatpush1.msra.mxu0 %v1103
        %1286 = vmatprep.mubr.f32.mxu0 %v1036
        %1287 = vmatmul.mubr.f32.gmra.mrb[0].mxu0 %v1035
        %v1288 = vpop.f32.mrb[0].mxu0
        %v1289 = vadd.f32 %v1219, %v1288
        %v1290 = vpop.f32.mrb[0].mxu0
        %1291 = vdwg.mxu0
        %1292 = vmatprep.subr.mxu0 0.0
        %1293 = vmatpush1.msra.mxu0 %v1104
        %1294 = vmatprep.subr.mxu0 0.0
        %1295 = vmatpush1.msra.mxu0 %v1105
        %1296 = vmatprep.subr.mxu0 0.0
        %1297 = vmatpush1.msra.mxu0 %v1106
        %1298 = vmatprep.subr.mxu0 0.0
        %1299 = vmatpush1.msra.mxu0 %v1107
        %1300 = vmatprep.subr.mxu0 0.0
        %1301 = vmatpush1.msra.mxu0 %v1108
        %1302 = vmatprep.subr.mxu0 0.0
        %1303 = vmatpush1.msra.mxu0 %v1109
        %1304 = vmatprep.subr.mxu0 0.0
        %1305 = vmatpush1.msra.mxu0 %v1110
        %1306 = vmatprep.subr.mxu0 0.0
        %1307 = vmatpush1.msra.mxu0 %v1111
        %1308 = vmatprep.subr.mxu0 0.0
        %1309 = vmatpush1.msra.mxu0 %v1112
        %1310 = vmatprep.subr.mxu0 0.0
        %1311 = vmatpush1.msra.mxu0 %v1113
        %1312 = vmatprep.subr.mxu0 0.0
        %1313 = vmatpush1.msra.mxu0 %v1114
        %1314 = vmatprep.subr.mxu0 0.0
        %1315 = vmatpush1.msra.mxu0 %v1115
        %1316 = vmatprep.subr.mxu0 0.0
        %1317 = vmatpush1.msra.mxu0 %v1116
        %1318 = vmatprep.subr.mxu0 0.0
        %1319 = vmatpush1.msra.mxu0 %v1117
        %1320 = vmatprep.subr.mxu0 0.0
        %1321 = vmatpush1.msra.mxu0 %v1118
        %1322 = vmatprep.subr.mxu0 0.0
        %1323 = vmatpush1.msra.mxu0 %v1119
        %1324 = vmatprep.subr.mxu0 0.0
        %1325 = vmatpush1.msra.mxu0 %v1120
        %1326 = vmatprep.subr.mxu0 0.0
        %1327 = vmatpush1.msra.mxu0 %v1121
        %1328 = vmatprep.subr.mxu0 0.0
        %1329 = vmatpush1.msra.mxu0 %v1122
        %1330 = vmatprep.subr.mxu0 0.0
        %1331 = vmatpush1.msra.mxu0 %v1123
        %1332 = vmatprep.subr.mxu0 0.0
        %1333 = vmatpush1.msra.mxu0 %v1124
        %1334 = vmatprep.subr.mxu0 0.0
        %1335 = vmatpush1.msra.mxu0 %v1125
        %1336 = vmatprep.subr.mxu0 0.0
        %1337 = vmatpush1.msra.mxu0 %v1126
        %1338 = vmatprep.subr.mxu0 0.0
        %1339 = vmatpush1.msra.mxu0 %v1127
        %1340 = vmatprep.subr.mxu0 0.0
        %1341 = vmatpush1.msra.mxu0 %v1128
        %1342 = vmatprep.subr.mxu0 0.0
        %1343 = vmatpush1.msra.mxu0 %v1129
        %1344 = vmatprep.subr.mxu0 0.0
        %1345 = vmatpush1.msra.mxu0 %v1130
        %1346 = vmatprep.subr.mxu0 0.0
        %1347 = vmatpush1.msra.mxu0 %v1131
        %1348 = vmatprep.subr.mxu0 0.0
        %1349 = vmatpush1.msra.mxu0 %v1132
        %1350 = vmatprep.subr.mxu0 0.0
        %1351 = vmatpush1.msra.mxu0 %v1133
        %1352 = vmatprep.subr.mxu0 0.0
        %1353 = vmatpush1.msra.mxu0 %v1134
        %1354 = vmatprep.subr.mxu0 0.0
        %1355 = vmatpush1.msra.mxu0 %v1135
        %1356 = vmatprep.mubr.f32.mxu0 %v1038
        %1357 = vmatmul.mubr.f32.gmra.mrb[0].mxu0 %v1037
        %v1358 = vpop.f32.mrb[0].mxu0
        %v1359 = vadd.f32 %v1289, %v1358
        %v1360 = vpop.f32.mrb[0].mxu0
        %1361 = vdwg.mxu0
        %1362 = vmatprep.subr.mxu0 0.0
        %1363 = vmatpush1.msra.mxu0 %v1136
        %1364 = vmatprep.subr.mxu0 0.0
        %1365 = vmatpush1.msra.mxu0 %v1137
        %1366 = vmatprep.subr.mxu0 0.0
        %1367 = vmatpush1.msra.mxu0 %v1138
        %1368 = vmatprep.subr.mxu0 0.0
        %1369 = vmatpush1.msra.mxu0 %v1139
        %1370 = vmatprep.subr.mxu0 0.0
        %1371 = vmatpush1.msra.mxu0 %v1140
        %1372 = vmatprep.subr.mxu0 0.0
        %1373 = vmatpush1.msra.mxu0 %v1141
        %1374 = vmatprep.subr.mxu0 0.0
        %1375 = vmatpush1.msra.mxu0 %v1142
        %1376 = vmatprep.subr.mxu0 0.0
        %1377 = vmatpush1.msra.mxu0 %v1143
        %1378 = vmatprep.subr.mxu0 0.0
        %1379 = vmatpush1.msra.mxu0 %v1144
        %1380 = vmatprep.subr.mxu0 0.0
        %1381 = vmatpush1.msra.mxu0 %v1145
        %1382 = vmatprep.subr.mxu0 0.0
        %1383 = vmatpush1.msra.mxu0 %v1146
        %1384 = vmatprep.subr.mxu0 0.0
        %1385 = vmatpush1.msra.mxu0 %v1147
        %1386 = vmatprep.subr.mxu0 0.0
        %1387 = vmatpush1.msra.mxu0 %v1148
        %1388 = vmatprep.subr.mxu0 0.0
        %1389 = vmatpush1.msra.mxu0 %v1149
        %1390 = vmatprep.subr.mxu0 0.0
        %1391 = vmatpush1.msra.mxu0 %v1150
        %1392 = vmatprep.subr.mxu0 0.0
        %1393 = vmatpush1.msra.mxu0 %v1151
        %1394 = vmatprep.subr.mxu0 0.0
        %1395 = vmatpush1.msra.mxu0 0.0
        %1396 = vmatprep.subr.mxu0 0.0
        %1397 = vmatpush1.msra.mxu0 0.0
        %1398 = vmatprep.subr.mxu0 0.0
        %1399 = vmatpush1.msra.mxu0 0.0
        %1400 = vmatprep.subr.mxu0 0.0
        %1401 = vmatpush1.msra.mxu0 0.0
        %1402 = vmatprep.subr.mxu0 0.0
        %1403 = vmatpush1.msra.mxu0 0.0
        %1404 = vmatprep.subr.mxu0 0.0
        %1405 = vmatpush1.msra.mxu0 0.0
        %1406 = vmatprep.subr.mxu0 0.0
        %1407 = vmatpush1.msra.mxu0 0.0
        %1408 = vmatprep.subr.mxu0 0.0
        %1409 = vmatpush1.msra.mxu0 0.0
        %1410 = vmatprep.subr.mxu0 0.0
        %1411 = vmatpush1.msra.mxu0 0.0
        %1412 = vmatprep.subr.mxu0 0.0
        %1413 = vmatpush1.msra.mxu0 0.0
        %1414 = vmatprep.subr.mxu0 0.0
        %1415 = vmatpush1.msra.mxu0 0.0
        %1416 = vmatprep.subr.mxu0 0.0
        %1417 = vmatpush1.msra.mxu0 0.0
        %1418 = vmatprep.subr.mxu0 0.0
        %1419 = vmatpush1.msra.mxu0 0.0
        %1420 = vmatprep.subr.mxu0 0.0
        %1421 = vmatpush1.msra.mxu0 0.0
        %1422 = vmatprep.subr.mxu0 0.0
        %1423 = vmatpush1.msra.mxu0 0.0
        %1424 = vmatprep.subr.mxu0 0.0
        %1425 = vmatpush1.msra.mxu0 0.0
        %1426 = vmatprep.mubr.f32.mxu0 0.0
        %1427 = vmatmul.mubr.f32.gmra.mrb[0].mxu0 %v1039
        %v1428 = vpop.f32.mrb[0].mxu0
        %v1429 = vadd.f32 %v1359, %v1428
        %v1430 = vpop.f32.mrb[0].mxu0
        %1431 = vdwg.mxu0
        %vm1432 = vcmask 400384
        %1433 = vst.msk [vmem:[%s190] sm:$0xff] %vm1432, %v1429
        %s1434 = sand.u32 %s115, 1
        %s1435 = scalar_lea.sflag [#allocation3], %s1434
        %s1436 = sand.u32 %s115, 1
        %s1437 = smul.addr %s1436, 8
        %s1438 = scalar_lea.vmem [#allocation2], %s1437
        // Predicated region
        $region37: #{tpu_custom_call.1} parent=35 // pred_check
          %p1439 = pneg %p125
        $region38: #{tpu_custom_call.1} parent=35 // pred_check_branch
          %1441 = sbr.rel (%p1439) target = $region40
        $region39: #{tpu_custom_call.1} parent=35 // pred_region
          %s1443 = ssub.s32 128, 128
          %1444 = vsyncadd %s1435, %s1443
          %s1445 = smul.addr %s18, 128
          %s1446 = scalar_lea.hbm %s4, %s1445
          %s1448 = sshll.u32 %s1438, 4
          %s1449 = int_to_ptr.vmem [resolvable:$true] %s1448
          %1451 = dma.vmem_to_hbm [thread:$0]  %s1449, 128, %s1446, %s1435
        $region40: #{tpu_custom_call.1} parent=35 // pred_fallthru
          _
      $region36: #{tpu_custom_call.1} parent=5 // pred_fallthru
        _
      %p1452 = scmp.le.s32.totalorder 2, %s13
      // Predicated region
      $region41: #{tpu_custom_call.1} parent=5 // pred_check
        %p1453 = pneg %p1452
      $region42: #{tpu_custom_call.1} parent=5 // pred_check_branch
        %1455 = sbr.rel (%p1453) target = $region44
      $region43: #{tpu_custom_call.1} parent=5 // pred_region
        %s1456 = ssub.s32 %s13, 2
        // Predicated region
        $region45: #{tpu_custom_call.1} parent=43 // pred_check
          %p1457 = pneg %p131
        $region46: #{tpu_custom_call.1} parent=43 // pred_check_branch
          %1459 = sbr.rel (%p1457) target = $region48
        $region47: #{tpu_custom_call.1} parent=43 // pred_region
          %s1460 = sand.u32 %s116, 1
          %s1461 = scalar_lea.sflag [#allocation3], %s1460
          %s1462 = sand.u32 %s116, 1
          %s1463 = smul.addr %s1462, 8
          %s1464 = scalar_lea.vmem [#allocation2], %s1463
          %1465 = dma.done %s1461, 128
        $region48: #{tpu_custom_call.1} parent=43 // pred_fallthru
          _
      $region44: #{tpu_custom_call.1} parent=5 // pred_fallthru
        _
    $region6: #{tpu_custom_call.1} parent=1 // loop_footer
      %s17 = sadd.s32 1, %s13
    $region7: #{tpu_custom_call.1} parent=1 // loop_footer_branch
      %12 = sbr.rel target = $region3
    $region8: #{tpu_custom_call.1} parent=1 // loop_exit
      _
    %1466 = vsyncpa [#allocation3], 1
    %s1467 = scalar_lea.sflag [#allocation3], 1
    %1468 = vsyncpa %s1467, 1

</llo_original>
